<compile_context>
chip_gen: v7x
topology: tpu7x:2x2x1
jax: 0.10.0
libtpu: 0.0.40
codegen_flags: <defaults>
</compile_context>

<pallas_src>
import jax
import jax.numpy as jnp
from jax.experimental import pallas as pl


# ----------------------------------------------------------------------------
# Model config (small synthetic shapes)
# ----------------------------------------------------------------------------
C_IN = 3            # RGB
H = W = 16          # image size (scaled down from min_image_size=800)
CF = 32             # backbone feature channels
HIDDEN = 64         # box head hidden size
NUM_CLASSES = 8     # incl. background (class 0)
K_PROP = 8          # fixed number of proposals kept (no dynamic filtering)
P = 4               # ROI / mask resolution (scaled down from 28)
K_IM2COL = C_IN * 9                     # 27 tap*channel columns of the 3x3 conv
K_CONV = 32                             # im2col K padded 27 -> 32 (lane friendly)
OBJ_LANES = 8                           # RPN objectness replicated over 8 lanes
NHEAD = NUM_CLASSES + NUM_CLASSES * 4   # 40: packed [cls softmax | box deltas]


def _fs(shape):
    """Full-array BlockSpec for a grid=(1,) launch."""
    n = len(shape)
    return pl.BlockSpec(shape, lambda i: (0,) * n)


# ----------------------------------------------------------------------------
# Kernel A: backbone 3x3 conv (as im2col matmul) + ReLU + RPN objectness.
# feat stays resident in VMEM for the RPN 1x1 conv (no extra launch / HBM trip).
# ----------------------------------------------------------------------------
def _backbone_rpn_kernel(patches_ref, w1_ref, b1_ref, wrpn_ref, brpn_ref,
                         feat_ref, obj_ref):
    feat = jnp.dot(patches_ref[...], w1_ref[...],
                   preferred_element_type=jnp.float32)        # MXU, bf16 operands
    feat = jnp.maximum(feat + b1_ref[...], 0.0)               # f32 VPU epilogue
    feat_ref[...] = feat
    obj = jnp.dot(feat.astype(wrpn_ref.dtype), wrpn_ref[...],
                  preferred_element_type=jnp.float32) + brpn_ref[...]
    obj_ref[...] = obj


def backbone_rpn(patches, w1, b1, wrpn, brpn):
    M = patches.shape[0]
    return pl.pallas_call(
        _backbone_rpn_kernel,
        out_shape=(jax.ShapeDtypeStruct((M, CF), jnp.float32),
                   jax.ShapeDtypeStruct((M, OBJ_LANES), jnp.float32)),
        grid=(1,),
        in_specs=[_fs(patches.shape), _fs(w1.shape), _fs(b1.shape),
                  _fs(wrpn.shape), _fs(brpn.shape)],
        out_specs=(_fs((M, CF)), _fs((M, OBJ_LANES))),
    )(patches, w1, b1, wrpn, brpn)


# ----------------------------------------------------------------------------
# Kernel B: box head (fc1 + ReLU, fused [cls|box] matmul, softmax epilogue)
#           + mask head (1x1 conv + ReLU, 1x1 conv + sigmoid).
# ----------------------------------------------------------------------------
def _heads_kernel(roi_flat_ref, roi_pix_ref, wf_ref, bf_ref, wcb_ref, bcb_ref,
                  wmc_ref, bmc_ref, wmp_ref, bmp_ref, head_ref, mask_ref):
    # ---- box head ------------------------------------------------------------
    hid = jnp.dot(roi_flat_ref[...], wf_ref[...],
                  preferred_element_type=jnp.float32)
    hid = jnp.maximum(hid + bf_ref[...], 0.0)
    cb = jnp.dot(hid.astype(wcb_ref.dtype), wcb_ref[...],
                 preferred_element_type=jnp.float32) + bcb_ref[...]   # (K, 40)
    # Masked softmax over the first NUM_CLASSES lanes (EUP exp + approx recip);
    # box-delta lanes pass through untouched -> single lane-dense output slab.
    lane = jax.lax.broadcasted_iota(jnp.int32, cb.shape, 1)
    is_cls = lane < NUM_CLASSES
    m = jnp.max(jnp.where(is_cls, cb, -jnp.inf), axis=-1, keepdims=True)
    e = jnp.exp(jnp.where(is_cls, cb - m, 0.0))
    denom = jnp.sum(jnp.where(is_cls, e, 0.0), axis=-1, keepdims=True)
    probs = e * pl.reciprocal(denom, approx=True)
    head_ref[...] = jnp.where(is_cls, probs, cb)

    # ---- mask head -----------------------------------------------------------
    mh = jnp.dot(roi_pix_ref[...], wmc_ref[...],
                 preferred_element_type=jnp.float32)
    mh = jnp.maximum(mh + bmc_ref[...], 0.0)
    mp = jnp.dot(mh.astype(wmp_ref.dtype), wmp_ref[...],
                 preferred_element_type=jnp.float32) + bmp_ref[...]
    mask_ref[...] = jax.nn.sigmoid(mp)


def box_mask_heads(roi_flat, roi_pix, wf, bf, wcb, bcb, wmc, bmc, wmp, bmp):
    return pl.pallas_call(
        _heads_kernel,
        out_shape=(jax.ShapeDtypeStruct((K_PROP, NHEAD), jnp.float32),
                   jax.ShapeDtypeStruct((K_PROP * P * P, NUM_CLASSES), jnp.float32)),
        grid=(1,),
        in_specs=[_fs(roi_flat.shape), _fs(roi_pix.shape), _fs(wf.shape),
                  _fs(bf.shape), _fs(wcb.shape), _fs(bcb.shape), _fs(wmc.shape),
                  _fs(bmc.shape), _fs(wmp.shape), _fs(bmp.shape)],
        out_specs=(_fs((K_PROP, NHEAD)), _fs((K_PROP * P * P, NUM_CLASSES))),
    )(roi_flat, roi_pix, wf, bf, wcb, bcb, wmc, bmc, wmp, bmp)


# ----------------------------------------------------------------------------
# Glue: im2col for the 3x3 backbone conv (pure reshuffling, no compute)
# ----------------------------------------------------------------------------
def im2col_3x3(img):
    """img: (C, H, W) -> patches (H*W, K_CONV); column index = c*9 + (dy*3+dx),
    zero-padded from 27 to 32 so the MXU operand K dim is aligned."""
    C, Hh, Ww = img.shape
    p = jnp.pad(img, ((0, 0), (1, 1), (1, 1)))
    taps = [p[:, dy:dy + Hh, dx:dx + Ww] for dy in range(3) for dx in range(3)]
    patches = jnp.stack(taps, axis=0)            # (9, C, H, W)
    patches = patches.transpose(2, 3, 1, 0)      # (H, W, C, 9)
    patches = patches.reshape(Hh * Ww, C * 9)
    # TODO(synk): could instead accumulate 9 shifted matmuls inside kernel A
    # and skip this XLA-side im2col materialization entirely.
    return jnp.pad(patches, ((0, 0), (0, K_CONV - C * 9)))


# ----------------------------------------------------------------------------
# Deterministic parameters (PyTorch-style layouts)
# ----------------------------------------------------------------------------
def make_params(key):
    ks = jax.random.split(key, 12)

    def init(k, shape, fan_in):
        return jax.random.normal(k, shape, jnp.float32) / jnp.sqrt(fan_in)

    return {
        # backbone: 3x3 conv C_IN -> CF  (PyTorch weight layout (Cout,Cin,3,3))
        "conv1_w": init(ks[0], (CF, C_IN, 3, 3), C_IN * 9),
        "conv1_b": jnp.zeros((CF,), jnp.float32),
        # RPN objectness: 1x1 conv CF -> 1
        "rpn_w": init(ks[1], (CF, 1), CF),
        "rpn_b": jnp.zeros((1,), jnp.float32),
        # box head
        "fc1_w": init(ks[2], (P * P * CF, HIDDEN), P * P * CF),
        "fc1_b": jnp.zeros((HIDDEN,), jnp.float32),
        "cls_w": init(ks[3], (HIDDEN, NUM_CLASSES), HIDDEN),
        "cls_b": jnp.zeros((NUM_CLASSES,), jnp.float32),
        "box_w": init(ks[4], (HIDDEN, NUM_CLASSES * 4), HIDDEN),
        "box_b": jnp.zeros((NUM_CLASSES * 4,), jnp.float32),
        # mask head: 1x1 conv CF -> CF (relu), then 1x1 conv CF -> NUM_CLASSES
        "mconv_w": init(ks[5], (CF, CF), CF),
        "mconv_b": jnp.zeros((CF,), jnp.float32),
        "mpred_w": init(ks[6], (CF, NUM_CLASSES), CF),
        "mpred_b": jnp.zeros((NUM_CLASSES,), jnp.float32),
    }


# ----------------------------------------------------------------------------
# Forward pass (mirrors MaskRCNNModel.forward's output contract)
# ----------------------------------------------------------------------------
def mask_rcnn_forward(image, params):
    """image: (C_IN, H, W) float32 (PyTorch CHW; batch of 1 is implicit)."""
    f32, bf16 = jnp.float32, jnp.bfloat16

    # ---- parameter packing for the fused kernels -----------------------------
    w1 = params["conv1_w"].reshape(CF, K_IM2COL).T                      # (27, CF)
    w1 = jnp.pad(w1, ((0, K_CONV - K_IM2COL), (0, 0))).astype(bf16)     # (32, CF)
    b1 = params["conv1_b"].reshape(1, CF).astype(f32)
    wrpn = jnp.tile(params["rpn_w"], (1, OBJ_LANES)).astype(bf16)       # (CF, 8)
    brpn = jnp.tile(params["rpn_b"].reshape(1, 1), (1, OBJ_LANES)).astype(f32)

    wf = params["fc1_w"].astype(bf16)                                   # (512, 64)
    bf = params["fc1_b"].reshape(1, HIDDEN).astype(f32)
    wcb = jnp.concatenate([params["cls_w"], params["box_w"]], axis=1).astype(bf16)
    bcb = jnp.concatenate([params["cls_b"], params["box_b"]]).reshape(1, NHEAD).astype(f32)
    wmc = params["mconv_w"].astype(bf16)
    bmc = params["mconv_b"].reshape(1, CF).astype(f32)
    wmp = params["mpred_w"].astype(bf16)
    bmp = params["mpred_b"].reshape(1, NUM_CLASSES).astype(f32)

    # ---- kernel A: backbone conv + ReLU + RPN objectness (1 fused launch) ----
    patches = im2col_3x3(image).astype(bf16)                            # (256, 32)
    feat, obj = backbone_rpn(patches, w1, b1, wrpn, brpn)
    obj = obj[:, 0]                                                     # (H*W,)

    # ---- proposal selection ---------------------------------------------------
    # TODO(synk): real RPN uses per-anchor score threshold + NMS (dynamic
    # shapes, no clean fixed-shape Pallas equivalent); fixed top-K instead.
    _, top_idx = jax.lax.top_k(obj, K_PROP)
    ys = (top_idx // W).astype(jnp.int32)
    xs = (top_idx % W).astype(jnp.int32)
    anchor = 4.0
    xf = xs.astype(f32)
    yf = ys.astype(f32)
    prop_boxes = jnp.stack([xf - anchor, yf - anchor, xf + anchor, yf + anchor],
                           axis=-1)                                     # (K, 4)

    # ---- simplified ROI pooling (XLA glue) ------------------------------------
    # TODO(synk): RoIAlign bilinear sampling replaced by a clamped PxP window
    # crop; the gather could move in-kernel via scalar prefetch + pl.ds, kept
    # in XLA glue here to keep the kernel structure data-independent.
    feat_map = feat.reshape(H, W, CF)

    def gather_roi(y, x):
        y0 = jnp.clip(y - P // 2, 0, H - P)
        x0 = jnp.clip(x - P // 2, 0, W - P)
        return jax.lax.dynamic_slice(feat_map, (y0, x0, 0), (P, P, CF))

    roi_feats = jax.vmap(gather_roi)(ys, xs)                            # (K, P, P, CF)
    roi_flat = roi_feats.reshape(K_PROP, P * P * CF).astype(bf16)       # (8, 512)
    roi_pix = roi_feats.reshape(K_PROP * P * P, CF).astype(bf16)        # (128, 32)

    # ---- kernel B: box head + softmax + mask head (1 fused launch) ------------
    head_out, mask_probs = box_mask_heads(roi_flat, roi_pix, wf, bf, wcb, bcb,
                                          wmc, bmc, wmp, bmp)
    cls_probs = head_out[:, :NUM_CLASSES]                               # (K, 8)
    box_deltas = head_out[:, NUM_CLASSES:]                              # (K, 32)

    fg_probs = cls_probs[:, 1:]
    labels = (jnp.argmax(fg_probs, axis=1) + 1).astype(jnp.int32)       # (K,)
    scores = jnp.max(fg_probs, axis=1)                                  # (K,)

    deltas = box_deltas.reshape(K_PROP, NUM_CLASSES, 4)[jnp.arange(K_PROP), labels]
    # TODO(synk): simplified linear box decode (real decoder uses exp(dw),exp(dh)).
    bbox = prop_boxes + deltas
    bbox = jnp.stack([jnp.clip(bbox[:, 0], 0.0, W - 1.0),
                      jnp.clip(bbox[:, 1], 0.0, H - 1.0),
                      jnp.clip(bbox[:, 2], 0.0, W - 1.0),
                      jnp.clip(bbox[:, 3], 0.0, H - 1.0)], axis=-1)     # (K, 4)

    mprobs = mask_probs.reshape(K_PROP, P, P, NUM_CLASSES)
    masks = mprobs[jnp.arange(K_PROP), :, :, labels]                    # (K, P, P)
    masks = masks[:, None, :, :]                                        # (K,1,P,P)

    # matches: (result.bbox, labels, mask, scores)
    return bbox, labels, masks, scores


# TODO(synk): confidence_threshold=0.7 filtering and per-class NMS of the real
# COCODemo post-processor produce dynamic-length outputs; kept fixed-K here.
# TODO(synk): at real MaskRCNN scale, tile the matmuls over a parallel grid
# (megacore) with K marked "arbitrary" instead of grid=(1,) full-array blocks.

if __name__ == "__main__":
    key = jax.random.PRNGKey(0)
    k_img, k_par = jax.random.split(key)
    image = jax.random.normal(k_img, (C_IN, H, W), jnp.float32)
    params = make_params(k_par)

    fwd = jax.jit(mask_rcnn_forward)
    bbox, labels, masks, scores = fwd(image, params)
    jax.block_until_ready((bbox, labels, masks, scores))

    assert bbox.shape == (K_PROP, 4) and bbox.dtype == jnp.float32
    assert labels.shape == (K_PROP,) and labels.dtype == jnp.int32
    assert masks.shape == (K_PROP, 1, P, P) and masks.dtype == jnp.float32
    assert scores.shape == (K_PROP,) and scores.dtype == jnp.float32
    print("KERNEL_OK")
</pallas_src>

<mosaic_0001>
module attributes {stable_mosaic.version = 11 : i64} {
  func.func @_backbone_rpn_kernel(%arg0: i32, %arg1: memref<256x32xbf16, #tpu.memory_space<vmem>>, %arg2: memref<32x32xbf16, #tpu.memory_space<vmem>>, %arg3: memref<1x32xf32, #tpu.memory_space<vmem>>, %arg4: memref<32x8xbf16, #tpu.memory_space<vmem>>, %arg5: memref<1x8xf32, #tpu.memory_space<vmem>>, %arg6: memref<256x32xf32, #tpu.memory_space<vmem>>, %arg7: memref<256x8xf32, #tpu.memory_space<vmem>>) attributes {dimension_semantics = [#tpu.dimension_semantics<arbitrary>], iteration_bounds = array<i64: 1>, scalar_prefetch = 0 : i64, scratch_operands = 0 : i64, tpu.core_type = #tpu.core_type<tc>, window_params = [{pipeline_mode = #tpu.pipeline_mode<synchronous>, transform_indices = @transform_0, window_bounds = array<i64: 256, 32>}, {pipeline_mode = #tpu.pipeline_mode<synchronous>, transform_indices = @transform_1, window_bounds = array<i64: 32, 32>}, {pipeline_mode = #tpu.pipeline_mode<synchronous>, transform_indices = @transform_2, window_bounds = array<i64: 1, 32>}, {pipeline_mode = #tpu.pipeline_mode<synchronous>, transform_indices = @transform_3, window_bounds = array<i64: 32, 8>}, {pipeline_mode = #tpu.pipeline_mode<synchronous>, transform_indices = @transform_4, window_bounds = array<i64: 1, 8>}, {pipeline_mode = #tpu.pipeline_mode<synchronous>, transform_indices = @transform_5, window_bounds = array<i64: 256, 32>}, {pipeline_mode = #tpu.pipeline_mode<synchronous>, transform_indices = @transform_6, window_bounds = array<i64: 256, 8>}]} {
    %c0 = arith.constant 0 : index
    %c0_0 = arith.constant 0 : index
    %0 = vector.load %arg1[%c0, %c0_0] : memref<256x32xbf16, #tpu.memory_space<vmem>>, vector<256x32xbf16>
    %c0_1 = arith.constant 0 : index
    %c0_2 = arith.constant 0 : index
    %1 = vector.load %arg2[%c0_1, %c0_2] : memref<32x32xbf16, #tpu.memory_space<vmem>>, vector<32x32xbf16>
    %cst = arith.constant dense<0.000000e+00> : vector<256x32xf32>
    %2 = tpu.matmul %0, %1, %cst {dimension_numbers = #tpu.dot_dimension_numbers<[1], [0], [0], [1], [0, 0, 1, 1], [], []>} : vector<256x32xbf16>, vector<32x32xbf16>, vector<256x32xf32> -> vector<256x32xf32>
    %c0_3 = arith.constant 0 : index
    %c0_4 = arith.constant 0 : index
    %3 = vector.load %arg3[%c0_3, %c0_4] : memref<1x32xf32, #tpu.memory_space<vmem>>, vector<1x32xf32>
    %4 = vector.broadcast %3 : vector<1x32xf32> to vector<256x32xf32>
    %5 = arith.addf %2, %4 : vector<256x32xf32>
    %cst_5 = arith.constant 0.000000e+00 : f32
    %6 = vector.broadcast %cst_5 : f32 to vector<256x32xf32>
    %7 = arith.maximumf %5, %6 : vector<256x32xf32>
    %c0_6 = arith.constant 0 : index
    %c0_7 = arith.constant 0 : index
    %8 = vector.load %arg6[%c0_6, %c0_7] : memref<256x32xf32, #tpu.memory_space<vmem>>, vector<256x32xf32>
    tpu.vector_store %arg6[%c0_6, %c0_7], %7 {strides = array<i32>} : memref<256x32xf32, #tpu.memory_space<vmem>>, vector<256x32xf32>,
    %9 = arith.truncf %7 : vector<256x32xf32> to vector<256x32xbf16>
    %c0_8 = arith.constant 0 : index
    %c0_9 = arith.constant 0 : index
    %10 = vector.load %arg4[%c0_8, %c0_9] : memref<32x8xbf16, #tpu.memory_space<vmem>>, vector<32x8xbf16>
    %cst_10 = arith.constant dense<0.000000e+00> : vector<256x8xf32>
    %11 = tpu.matmul %9, %10, %cst_10 {dimension_numbers = #tpu.dot_dimension_numbers<[1], [0], [0], [1], [0, 0, 1, 1], [], []>} : vector<256x32xbf16>, vector<32x8xbf16>, vector<256x8xf32> -> vector<256x8xf32>
    %c0_11 = arith.constant 0 : index
    %c0_12 = arith.constant 0 : index
    %12 = vector.load %arg5[%c0_11, %c0_12] : memref<1x8xf32, #tpu.memory_space<vmem>>, vector<1x8xf32>
    %13 = vector.broadcast %12 : vector<1x8xf32> to vector<256x8xf32>
    %14 = arith.addf %11, %13 : vector<256x8xf32>
    %c0_13 = arith.constant 0 : index
    %c0_14 = arith.constant 0 : index
    %15 = vector.load %arg7[%c0_13, %c0_14] : memref<256x8xf32, #tpu.memory_space<vmem>>, vector<256x8xf32>
    tpu.vector_store %arg7[%c0_13, %c0_14], %14 {strides = array<i32>} : memref<256x8xf32, #tpu.memory_space<vmem>>, vector<256x8xf32>,
    return
  }
  func.func @transform_0(%arg0: i32) -> (i32, i32) {
    %c0_i32 = arith.constant 0 : i32
    %c0_i32_0 = arith.constant 0 : i32
    %c0_i32_1 = arith.constant 0 : i32
    return %c0_i32, %c0_i32_0 : i32, i32
  }
  func.func @transform_1(%arg0: i32) -> (i32, i32) {
    %c0_i32 = arith.constant 0 : i32
    %c0_i32_0 = arith.constant 0 : i32
    %c0_i32_1 = arith.constant 0 : i32
    return %c0_i32, %c0_i32_0 : i32, i32
  }
  func.func @transform_2(%arg0: i32) -> (i32, i32) {
    %c0_i32 = arith.constant 0 : i32
    %c0_i32_0 = arith.constant 0 : i32
    %c0_i32_1 = arith.constant 0 : i32
    return %c0_i32, %c0_i32_0 : i32, i32
  }
  func.func @transform_3(%arg0: i32) -> (i32, i32) {
    %c0_i32 = arith.constant 0 : i32
    %c0_i32_0 = arith.constant 0 : i32
    %c0_i32_1 = arith.constant 0 : i32
    return %c0_i32, %c0_i32_0 : i32, i32
  }
  func.func @transform_4(%arg0: i32) -> (i32, i32) {
    %c0_i32 = arith.constant 0 : i32
    %c0_i32_0 = arith.constant 0 : i32
    %c0_i32_1 = arith.constant 0 : i32
    return %c0_i32, %c0_i32_0 : i32, i32
  }
  func.func @transform_5(%arg0: i32) -> (i32, i32) {
    %c0_i32 = arith.constant 0 : i32
    %c0_i32_0 = arith.constant 0 : i32
    %c0_i32_1 = arith.constant 0 : i32
    return %c0_i32, %c0_i32_0 : i32, i32
  }
  func.func @transform_6(%arg0: i32) -> (i32, i32) {
    %c0_i32 = arith.constant 0 : i32
    %c0_i32_0 = arith.constant 0 : i32
    %c0_i32_1 = arith.constant 0 : i32
    return %c0_i32, %c0_i32_0 : i32, i32
  }
}

module attributes {stable_mosaic.version = 11 : i64} {
  func.func @_heads_kernel(%arg0: i32, %arg1: memref<8x512xbf16, #tpu.memory_space<vmem>>, %arg2: memref<128x32xbf16, #tpu.memory_space<vmem>>, %arg3: memref<512x64xbf16, #tpu.memory_space<vmem>>, %arg4: memref<1x64xf32, #tpu.memory_space<vmem>>, %arg5: memref<64x40xbf16, #tpu.memory_space<vmem>>, %arg6: memref<1x40xf32, #tpu.memory_space<vmem>>, %arg7: memref<32x32xbf16, #tpu.memory_space<vmem>>, %arg8: memref<1x32xf32, #tpu.memory_space<vmem>>, %arg9: memref<32x8xbf16, #tpu.memory_space<vmem>>, %arg10: memref<1x8xf32, #tpu.memory_space<vmem>>, %arg11: memref<8x40xf32, #tpu.memory_space<vmem>>, %arg12: memref<128x8xf32, #tpu.memory_space<vmem>>) attributes {dimension_semantics = [#tpu.dimension_semantics<arbitrary>], iteration_bounds = array<i64: 1>, scalar_prefetch = 0 : i64, scratch_operands = 0 : i64, tpu.core_type = #tpu.core_type<tc>, window_params = [{pipeline_mode = #tpu.pipeline_mode<synchronous>, transform_indices = @transform_0, window_bounds = array<i64: 8, 512>}, {pipeline_mode = #tpu.pipeline_mode<synchronous>, transform_indices = @transform_1, window_bounds = array<i64: 128, 32>}, {pipeline_mode = #tpu.pipeline_mode<synchronous>, transform_indices = @transform_2, window_bounds = array<i64: 512, 64>}, {pipeline_mode = #tpu.pipeline_mode<synchronous>, transform_indices = @transform_3, window_bounds = array<i64: 1, 64>}, {pipeline_mode = #tpu.pipeline_mode<synchronous>, transform_indices = @transform_4, window_bounds = array<i64: 64, 40>}, {pipeline_mode = #tpu.pipeline_mode<synchronous>, transform_indices = @transform_5, window_bounds = array<i64: 1, 40>}, {pipeline_mode = #tpu.pipeline_mode<synchronous>, transform_indices = @transform_6, window_bounds = array<i64: 32, 32>}, {pipeline_mode = #tpu.pipeline_mode<synchronous>, transform_indices = @transform_7, window_bounds = array<i64: 1, 32>}, {pipeline_mode = #tpu.pipeline_mode<synchronous>, transform_indices = @transform_8, window_bounds = array<i64: 32, 8>}, {pipeline_mode = #tpu.pipeline_mode<synchronous>, transform_indices = @transform_9, window_bounds = array<i64: 1, 8>}, {pipeline_mode = #tpu.pipeline_mode<synchronous>, transform_indices = @transform_10, window_bounds = array<i64: 8, 40>}, {pipeline_mode = #tpu.pipeline_mode<synchronous>, transform_indices = @transform_11, window_bounds = array<i64: 128, 8>}]} {
    %c0 = arith.constant 0 : index
    %c0_0 = arith.constant 0 : index
    %0 = vector.load %arg1[%c0, %c0_0] : memref<8x512xbf16, #tpu.memory_space<vmem>>, vector<8x512xbf16>
    %c0_1 = arith.constant 0 : index
    %c0_2 = arith.constant 0 : index
    %1 = vector.load %arg3[%c0_1, %c0_2] : memref<512x64xbf16, #tpu.memory_space<vmem>>, vector<512x64xbf16>
    %cst = arith.constant dense<0.000000e+00> : vector<8x64xf32>
    %2 = tpu.matmul %0, %1, %cst {dimension_numbers = #tpu.dot_dimension_numbers<[1], [0], [0], [1], [0, 0, 1, 1], [], []>} : vector<8x512xbf16>, vector<512x64xbf16>, vector<8x64xf32> -> vector<8x64xf32>
    %c0_3 = arith.constant 0 : index
    %c0_4 = arith.constant 0 : index
    %3 = vector.load %arg4[%c0_3, %c0_4] : memref<1x64xf32, #tpu.memory_space<vmem>>, vector<1x64xf32>
    %4 = vector.broadcast %3 : vector<1x64xf32> to vector<8x64xf32>
    %5 = arith.addf %2, %4 : vector<8x64xf32>
    %cst_5 = arith.constant 0.000000e+00 : f32
    %6 = vector.broadcast %cst_5 : f32 to vector<8x64xf32>
    %7 = arith.maximumf %5, %6 : vector<8x64xf32>
    %8 = arith.truncf %7 : vector<8x64xf32> to vector<8x64xbf16>
    %c0_6 = arith.constant 0 : index
    %c0_7 = arith.constant 0 : index
    %9 = vector.load %arg5[%c0_6, %c0_7] : memref<64x40xbf16, #tpu.memory_space<vmem>>, vector<64x40xbf16>
    %cst_8 = arith.constant dense<0.000000e+00> : vector<8x40xf32>
    %10 = tpu.matmul %8, %9, %cst_8 {dimension_numbers = #tpu.dot_dimension_numbers<[1], [0], [0], [1], [0, 0, 1, 1], [], []>} : vector<8x64xbf16>, vector<64x40xbf16>, vector<8x40xf32> -> vector<8x40xf32>
    %c0_9 = arith.constant 0 : index
    %c0_10 = arith.constant 0 : index
    %11 = vector.load %arg6[%c0_9, %c0_10] : memref<1x40xf32, #tpu.memory_space<vmem>>, vector<1x40xf32>
    %12 = vector.broadcast %11 : vector<1x40xf32> to vector<8x40xf32>
    %13 = arith.addf %10, %12 : vector<8x40xf32>
    %14 = tpu.iota {dimensions = array<i32: 1>} : vector<8x40xi32>
    %c8_i32 = arith.constant 8 : i32
    %15 = vector.broadcast %c8_i32 : i32 to vector<8x40xi32>
    %16 = arith.cmpi slt, %14, %15 : vector<8x40xi32>
    %cst_11 = arith.constant 0xFF800000 : f32
    %17 = vector.broadcast %cst_11 : f32 to vector<8x40xf32>
    %18 = arith.select %16, %13, %17 : vector<8x40xi1>, vector<8x40xf32>
    %cst_12 = arith.constant dense<0xFF800000> : vector<8xf32>
    %19 = vector.multi_reduction <maximumf>, %18, %cst_12 [1] : vector<8x40xf32> to vector<8xf32>
    %20 = vector.shape_cast %19 : vector<8xf32> to vector<8x1xf32>
    %21 = vector.broadcast %20 : vector<8x1xf32> to vector<8x40xf32>
    %22 = arith.subf %13, %21 : vector<8x40xf32>
    %cst_13 = arith.constant 0.000000e+00 : f32
    %23 = vector.broadcast %cst_13 : f32 to vector<8x40xf32>
    %24 = arith.select %16, %22, %23 : vector<8x40xi1>, vector<8x40xf32>
    %25 = math.exp %24 : vector<8x40xf32>
    %cst_14 = arith.constant 0.000000e+00 : f32
    %26 = vector.broadcast %cst_14 : f32 to vector<8x40xf32>
    %27 = arith.select %16, %25, %26 : vector<8x40xi1>, vector<8x40xf32>
    %cst_15 = arith.constant dense<0.000000e+00> : vector<8xf32>
    %28 = vector.multi_reduction <add>, %27, %cst_15 [1] : vector<8x40xf32> to vector<8xf32>
    %29 = vector.shape_cast %28 : vector<8xf32> to vector<8x1xf32>
    %30 = tpu.reciprocal %29 {approx = true} : vector<8x1xf32> -> vector<8x1xf32>
    %31 = vector.broadcast %30 : vector<8x1xf32> to vector<8x40xf32>
    %32 = arith.mulf %25, %31 : vector<8x40xf32>
    %33 = arith.select %16, %32, %13 : vector<8x40xi1>, vector<8x40xf32>
    %c0_16 = arith.constant 0 : index
    %c0_17 = arith.constant 0 : index
    %34 = vector.load %arg11[%c0_16, %c0_17] : memref<8x40xf32, #tpu.memory_space<vmem>>, vector<8x40xf32>
    tpu.vector_store %arg11[%c0_16, %c0_17], %33 {strides = array<i32>} : memref<8x40xf32, #tpu.memory_space<vmem>>, vector<8x40xf32>,
    %c0_18 = arith.constant 0 : index
    %c0_19 = arith.constant 0 : index
    %35 = vector.load %arg2[%c0_18, %c0_19] : memref<128x32xbf16, #tpu.memory_space<vmem>>, vector<128x32xbf16>
    %c0_20 = arith.constant 0 : index
    %c0_21 = arith.constant 0 : index
    %36 = vector.load %arg7[%c0_20, %c0_21] : memref<32x32xbf16, #tpu.memory_space<vmem>>, vector<32x32xbf16>
    %cst_22 = arith.constant dense<0.000000e+00> : vector<128x32xf32>
    %37 = tpu.matmul %35, %36, %cst_22 {dimension_numbers = #tpu.dot_dimension_numbers<[1], [0], [0], [1], [0, 0, 1, 1], [], []>} : vector<128x32xbf16>, vector<32x32xbf16>, vector<128x32xf32> -> vector<128x32xf32>
    %c0_23 = arith.constant 0 : index
    %c0_24 = arith.constant 0 : index
    %38 = vector.load %arg8[%c0_23, %c0_24] : memref<1x32xf32, #tpu.memory_space<vmem>>, vector<1x32xf32>
    %39 = vector.broadcast %38 : vector<1x32xf32> to vector<128x32xf32>
    %40 = arith.addf %37, %39 : vector<128x32xf32>
    %cst_25 = arith.constant 0.000000e+00 : f32
    %41 = vector.broadcast %cst_25 : f32 to vector<128x32xf32>
    %42 = arith.maximumf %40, %41 : vector<128x32xf32>
    %43 = arith.truncf %42 : vector<128x32xf32> to vector<128x32xbf16>
    %c0_26 = arith.constant 0 : index
    %c0_27 = arith.constant 0 : index
    %44 = vector.load %arg9[%c0_26, %c0_27] : memref<32x8xbf16, #tpu.memory_space<vmem>>, vector<32x8xbf16>
    %cst_28 = arith.constant dense<0.000000e+00> : vector<128x8xf32>
    %45 = tpu.matmul %43, %44, %cst_28 {dimension_numbers = #tpu.dot_dimension_numbers<[1], [0], [0], [1], [0, 0, 1, 1], [], []>} : vector<128x32xbf16>, vector<32x8xbf16>, vector<128x8xf32> -> vector<128x8xf32>
    %c0_29 = arith.constant 0 : index
    %c0_30 = arith.constant 0 : index
    %46 = vector.load %arg10[%c0_29, %c0_30] : memref<1x8xf32, #tpu.memory_space<vmem>>, vector<1x8xf32>
    %47 = vector.broadcast %46 : vector<1x8xf32> to vector<128x8xf32>
    %48 = arith.addf %45, %47 : vector<128x8xf32>
    %49 = arith.negf %48 : vector<128x8xf32>
    %50 = math.exp %49 : vector<128x8xf32>
    %cst_31 = arith.constant 1.000000e+00 : f32
    %51 = vector.broadcast %cst_31 : f32 to vector<128x8xf32>
    %52 = arith.addf %51, %50 : vector<128x8xf32>
    %53 = arith.divf %51, %52 : vector<128x8xf32>
    %c0_32 = arith.constant 0 : index
    %c0_33 = arith.constant 0 : index
    %54 = vector.load %arg12[%c0_32, %c0_33] : memref<128x8xf32, #tpu.memory_space<vmem>>, vector<128x8xf32>
    tpu.vector_store %arg12[%c0_32, %c0_33], %53 {strides = array<i32>} : memref<128x8xf32, #tpu.memory_space<vmem>>, vector<128x8xf32>,
    return
  }
  func.func @transform_0(%arg0: i32) -> (i32, i32) {
    %c0_i32 = arith.constant 0 : i32
    %c0_i32_0 = arith.constant 0 : i32
    %c0_i32_1 = arith.constant 0 : i32
    return %c0_i32, %c0_i32_0 : i32, i32
  }
  func.func @transform_1(%arg0: i32) -> (i32, i32) {
    %c0_i32 = arith.constant 0 : i32
    %c0_i32_0 = arith.constant 0 : i32
    %c0_i32_1 = arith.constant 0 : i32
    return %c0_i32, %c0_i32_0 : i32, i32
  }
  func.func @transform_2(%arg0: i32) -> (i32, i32) {
    %c0_i32 = arith.constant 0 : i32
    %c0_i32_0 = arith.constant 0 : i32
    %c0_i32_1 = arith.constant 0 : i32
    return %c0_i32, %c0_i32_0 : i32, i32
  }
  func.func @transform_3(%arg0: i32) -> (i32, i32) {
    %c0_i32 = arith.constant 0 : i32
    %c0_i32_0 = arith.constant 0 : i32
    %c0_i32_1 = arith.constant 0 : i32
    return %c0_i32, %c0_i32_0 : i32, i32
  }
  func.func @transform_4(%arg0: i32) -> (i32, i32) {
    %c0_i32 = arith.constant 0 : i32
    %c0_i32_0 = arith.constant 0 : i32
    %c0_i32_1 = arith.constant 0 : i32
    return %c0_i32, %c0_i32_0 : i32, i32
  }
  func.func @transform_5(%arg0: i32) -> (i32, i32) {
    %c0_i32 = arith.constant 0 : i32
    %c0_i32_0 = arith.constant 0 : i32
    %c0_i32_1 = arith.constant 0 : i32
    return %c0_i32, %c0_i32_0 : i32, i32
  }
  func.func @transform_6(%arg0: i32) -> (i32, i32) {
    %c0_i32 = arith.constant 0 : i32
    %c0_i32_0 = arith.constant 0 : i32
    %c0_i32_1 = arith.constant 0 : i32
    return %c0_i32, %c0_i32_0 : i32, i32
  }
  func.func @transform_7(%arg0: i32) -> (i32, i32) {
    %c0_i32 = arith.constant 0 : i32
    %c0_i32_0 = arith.constant 0 : i32
    %c0_i32_1 = arith.constant 0 : i32
    return %c0_i32, %c0_i32_0 : i32, i32
  }
  func.func @transform_8(%arg0: i32) -> (i32, i32) {
    %c0_i32 = arith.constant 0 : i32
    %c0_i32_0 = arith.constant 0 : i32
    %c0_i32_1 = arith.constant 0 : i32
    return %c0_i32, %c0_i32_0 : i32, i32
  }
  func.func @transform_9(%arg0: i32) -> (i32, i32) {
    %c0_i32 = arith.constant 0 : i32
    %c0_i32_0 = arith.constant 0 : i32
    %c0_i32_1 = arith.constant 0 : i32
    return %c0_i32, %c0_i32_0 : i32, i32
  }
  func.func @transform_10(%arg0: i32) -> (i32, i32) {
    %c0_i32 = arith.constant 0 : i32
    %c0_i32_0 = arith.constant 0 : i32
    %c0_i32_1 = arith.constant 0 : i32
    return %c0_i32, %c0_i32_0 : i32, i32
  }
  func.func @transform_11(%arg0: i32) -> (i32, i32) {
    %c0_i32 = arith.constant 0 : i32
    %c0_i32_0 = arith.constant 0 : i32
    %c0_i32_1 = arith.constant 0 : i32
    return %c0_i32, %c0_i32_0 : i32, i32
  }
}

</mosaic_0001>

<llo_original>
// kernel: custom-call.5
$region0: #{custom-call.5}
  %s0 = inlined_call_operand.vmem [shape: bf16[8,4,4,32], index: 0, kind: output, shape index: {}]

// kernel: mask_rcnn_forward.2
$region0: #{mask_rcnn_forward.2}
  #allocation0 [shape = 'u32[]', space=smem, size = 0x4, offset = 0x4, fixed_abs, tag = 'smem constant byte address 0x4 - core index']
  #allocation1 [shape = 'u32[144,128]{1,0:T(1,128)}', space=vmem, size = 0x12000, scoped, tag = 'internal scratch']
  %s0 = inlined_call_operand.vmem [shape: bf16[256,32], index: 0, kind: input, shape index: {}]
  %s1 = inlined_call_operand.vmem [shape: bf16[32,32], index: 1, kind: input, shape index: {}]
  %s2 = inlined_call_operand.vmem [shape: f32[1,32], index: 2, kind: input, shape index: {}]
  %s3 = inlined_call_operand.vmem [shape: bf16[32,8], index: 3, kind: input, shape index: {}]
  %s4 = inlined_call_operand.vmem [shape: f32[1,8], index: 4, kind: input, shape index: {}]
  %s5 = inlined_call_operand.vmem [shape: f32[256,32], index: 5, kind: output, shape index: {0}]
  %s6 = inlined_call_operand.vmem [shape: f32[256,8], index: 6, kind: output, shape index: {1}]
  %7 = xla_tuple %s5, %s6
  %s8 = sld [smem:[#allocation0]]
  $region38: #{mask_rcnn_forward.2} parent=0
    _
  %s10 = ssub.s32 1, %s8
  %s11 = scalar_select 0, %s10, %s8
  // Predicated region
  $region2: #{mask_rcnn_forward.2} parent=0 // pred_check
    _
  $region3: #{mask_rcnn_forward.2} parent=0 // pred_check_branch
    %13 = sbr.rel (0) target = $region5
  $region4: #{mask_rcnn_forward.2} parent=0 // pred_region
    _
  $region5: #{mask_rcnn_forward.2} parent=0 // pred_fallthru
    _
  // Predicated region
  $region6: #{mask_rcnn_forward.2} parent=0 // pred_check
    _
  $region7: #{mask_rcnn_forward.2} parent=0 // pred_check_branch
    %15 = sbr.rel (0) target = $region9
  $region8: #{mask_rcnn_forward.2} parent=0 // pred_region
    _
  $region9: #{mask_rcnn_forward.2} parent=0 // pred_fallthru
    _
  // Predicated region
  $region10: #{mask_rcnn_forward.2} parent=0 // pred_check
    _
  $region11: #{mask_rcnn_forward.2} parent=0 // pred_check_branch
    %17 = sbr.rel (0) target = $region13
  $region12: #{mask_rcnn_forward.2} parent=0 // pred_region
    _
  $region13: #{mask_rcnn_forward.2} parent=0 // pred_fallthru
    _
  // Predicated region
  $region14: #{mask_rcnn_forward.2} parent=0 // pred_check
    _
  $region15: #{mask_rcnn_forward.2} parent=0 // pred_check_branch
    %19 = sbr.rel (0) target = $region17
  $region16: #{mask_rcnn_forward.2} parent=0 // pred_region
    _
  $region17: #{mask_rcnn_forward.2} parent=0 // pred_fallthru
    _
  // Predicated region
  $region18: #{mask_rcnn_forward.2} parent=0 // pred_check
    _
  $region19: #{mask_rcnn_forward.2} parent=0 // pred_check_branch
    %21 = sbr.rel (0) target = $region21
  $region20: #{mask_rcnn_forward.2} parent=0 // pred_region
    _
  $region21: #{mask_rcnn_forward.2} parent=0 // pred_fallthru
    _
  %v23 = vld [vmem:[%s0] sm:$0xf]
  %v24 = vld [vmem:[%s0 + $0x4] sm:$0xf]
  %v25 = vld [vmem:[%s0 + $0x8] sm:$0xf]
  %v26 = vld [vmem:[%s0 + $0xc] sm:$0xf]
  %v27 = vld [vmem:[%s0 + $0x10] sm:$0xf]
  %v28 = vld [vmem:[%s0 + $0x14] sm:$0xf]
  %v29 = vld [vmem:[%s0 + $0x18] sm:$0xf]
  %v30 = vld [vmem:[%s0 + $0x1c] sm:$0xf]
  %v31 = vld [vmem:[%s0 + $0x20] sm:$0xf]
  %v32 = vld [vmem:[%s0 + $0x24] sm:$0xf]
  %v33 = vld [vmem:[%s0 + $0x28] sm:$0xf]
  %v34 = vld [vmem:[%s0 + $0x2c] sm:$0xf]
  %v35 = vld [vmem:[%s0 + $0x30] sm:$0xf]
  %v36 = vld [vmem:[%s0 + $0x34] sm:$0xf]
  %v37 = vld [vmem:[%s0 + $0x38] sm:$0xf]
  %v38 = vld [vmem:[%s0 + $0x3c] sm:$0xf]
  %v39 = vld [vmem:[%s0 + $0x40] sm:$0xf]
  %v40 = vld [vmem:[%s0 + $0x44] sm:$0xf]
  %v41 = vld [vmem:[%s0 + $0x48] sm:$0xf]
  %v42 = vld [vmem:[%s0 + $0x4c] sm:$0xf]
  %v43 = vld [vmem:[%s0 + $0x50] sm:$0xf]
  %v44 = vld [vmem:[%s0 + $0x54] sm:$0xf]
  %v45 = vld [vmem:[%s0 + $0x58] sm:$0xf]
  %v46 = vld [vmem:[%s0 + $0x5c] sm:$0xf]
  %v47 = vld [vmem:[%s0 + $0x60] sm:$0xf]
  %v48 = vld [vmem:[%s0 + $0x64] sm:$0xf]
  %v49 = vld [vmem:[%s0 + $0x68] sm:$0xf]
  %v50 = vld [vmem:[%s0 + $0x6c] sm:$0xf]
  %v51 = vld [vmem:[%s0 + $0x70] sm:$0xf]
  %v52 = vld [vmem:[%s0 + $0x74] sm:$0xf]
  %v53 = vld [vmem:[%s0 + $0x78] sm:$0xf]
  %v54 = vld [vmem:[%s0 + $0x7c] sm:$0xf]
  %v55 = vld [vmem:[%s1] sm:$0xf]
  %v56 = vld [vmem:[%s1 + $0x4] sm:$0xf]
  %v57 = vld [vmem:[%s1 + $0x8] sm:$0xf]
  %v58 = vld [vmem:[%s1 + $0xc] sm:$0xf]
  %v59 = vld [vmem:[%s2] sm:$0x1]
  %v61 = vlaneseq
  %v62 = vshrl.u32 %v61, 7
  %v63 = vsub.s32 0, %v62
  %v64 = vrot.slane %v59, %v63
  %v98 = vunpack.c.l.b16 %v23
  %v99 = vunpack.c.l.b16 %v24
  %v100 = vunpack.c.l.b16 %v25
  %v101 = vunpack.c.l.b16 %v26
  %v102 = vunpack.c.l.b16 %v27
  %v103 = vunpack.c.l.b16 %v28
  %v104 = vunpack.c.l.b16 %v29
  %v105 = vunpack.c.l.b16 %v30
  %v106 = vunpack.c.l.b16 %v31
  %v107 = vunpack.c.l.b16 %v32
  %v108 = vunpack.c.l.b16 %v33
  %v109 = vunpack.c.l.b16 %v34
  %v110 = vunpack.c.l.b16 %v35
  %v111 = vunpack.c.l.b16 %v36
  %v112 = vunpack.c.l.b16 %v37
  %v113 = vunpack.c.l.b16 %v38
  %v114 = vunpack.c.l.b16 %v39
  %v115 = vunpack.c.l.b16 %v40
  %v116 = vunpack.c.l.b16 %v41
  %v117 = vunpack.c.l.b16 %v42
  %v118 = vunpack.c.l.b16 %v43
  %v119 = vunpack.c.l.b16 %v44
  %v120 = vunpack.c.l.b16 %v45
  %v121 = vunpack.c.l.b16 %v46
  %v122 = vunpack.c.l.b16 %v47
  %v123 = vunpack.c.l.b16 %v48
  %v124 = vunpack.c.l.b16 %v49
  %v125 = vunpack.c.l.b16 %v50
  %v126 = vunpack.c.l.b16 %v51
  %v127 = vunpack.c.l.b16 %v52
  %v128 = vunpack.c.l.b16 %v53
  %v129 = vunpack.c.l.b16 %v54
  %v130 = vpack.c.b16 %v99, %v98
  %v131 = vpack.c.b16 %v101, %v100
  %v132 = vpack.c.b16 %v103, %v102
  %v133 = vpack.c.b16 %v105, %v104
  %v134 = vpack.c.b16 %v107, %v106
  %v135 = vpack.c.b16 %v109, %v108
  %v136 = vpack.c.b16 %v111, %v110
  %v137 = vpack.c.b16 %v113, %v112
  %v138 = vpack.c.b16 %v115, %v114
  %v139 = vpack.c.b16 %v117, %v116
  %v140 = vpack.c.b16 %v119, %v118
  %v141 = vpack.c.b16 %v121, %v120
  %v142 = vpack.c.b16 %v123, %v122
  %v143 = vpack.c.b16 %v125, %v124
  %v144 = vpack.c.b16 %v127, %v126
  %v145 = vpack.c.b16 %v129, %v128
  %v150 = vunpack.c.l.b16 %v55
  %v151 = vunpack.c.l.b16 %v56
  %v152 = vunpack.c.l.b16 %v57
  %v153 = vunpack.c.l.b16 %v58
  %v154 = vpack.c.b16 %v151, %v150
  %v155 = vpack.c.b16 %v153, %v152
  %vm158 = vcmask 261120
  %v160 = vsel %vm158, %v130, 0
  %v163 = vsel %vm158, %v131, 0
  %v166 = vsel %vm158, %v132, 0
  %v169 = vsel %vm158, %v133, 0
  %v172 = vsel %vm158, %v134, 0
  %v175 = vsel %vm158, %v135, 0
  %v178 = vsel %vm158, %v136, 0
  %v181 = vsel %vm158, %v137, 0
  %v184 = vsel %vm158, %v138, 0
  %v187 = vsel %vm158, %v139, 0
  %v190 = vsel %vm158, %v140, 0
  %v193 = vsel %vm158, %v141, 0
  %v196 = vsel %vm158, %v142, 0
  %v199 = vsel %vm158, %v143, 0
  %v202 = vsel %vm158, %v144, 0
  %v205 = vsel %vm158, %v145, 0
  %207 = vmatprep.subr.bf16.mxu0 0
  %208 = vmatpush1.bf16.msra.mxu0 %v154
  %209 = vmatprep.subr.bf16.mxu0 0
  %210 = vmatpush1.bf16.msra.mxu0 %v155
  %211 = vmatprep.subr.bf16.mxu0 0
  %212 = vmatpush1.bf16.msra.mxu0 0
  %213 = vmatprep.subr.bf16.mxu0 0
  %214 = vmatpush1.bf16.msra.mxu0 0
  %215 = vmatprep.subr.bf16.mxu0 0
  %216 = vmatpush1.bf16.msra.mxu0 0
  %217 = vmatprep.subr.bf16.mxu0 0
  %218 = vmatpush1.bf16.msra.mxu0 0
  %219 = vmatprep.subr.bf16.mxu0 0
  %220 = vmatpush1.bf16.msra.mxu0 0
  %221 = vmatprep.subr.bf16.mxu0 0
  %222 = vmatpush1.bf16.msra.mxu0 0
  %223 = vmatprep.subr.bf16.mxu0 0
  %224 = vmatpush1.bf16.msra.mxu0 0
  %225 = vmatprep.subr.bf16.mxu0 0
  %226 = vmatpush1.bf16.msra.mxu0 0
  %227 = vmatprep.subr.bf16.mxu0 0
  %228 = vmatpush1.bf16.msra.mxu0 0
  %229 = vmatprep.subr.bf16.mxu0 0
  %230 = vmatpush1.bf16.msra.mxu0 0
  %231 = vmatprep.subr.bf16.mxu0 0
  %232 = vmatpush1.bf16.msra.mxu0 0
  %233 = vmatprep.subr.bf16.mxu0 0
  %234 = vmatpush1.bf16.msra.mxu0 0
  %235 = vmatprep.subr.bf16.mxu0 0
  %236 = vmatpush1.bf16.msra.mxu0 0
  %237 = vmatprep.subr.bf16.mxu0 0
  %238 = vmatpush1.bf16.msra.mxu0 0
  %239 = vmatprep.mubr.bf16.mxu0 0
  %240 = vmatmul.mubr.bf16.gmra.mrb[0].mxu0 %v160
  %v241 = vpop.f32.mrb[0].mxu0
  %v242 = vadd.f32 %v64, %v241
  %v243 = vpop.f32.mrb[0].mxu0
  %v244 = vpop.f32.mrb[0].mxu0
  %v245 = vadd.f32 %v64, %v244
  %v246 = vpop.f32.mrb[0].mxu0
  %247 = vmatprep.mubr.bf16.mxu0 0
  %248 = vmatmul.mubr.bf16.gmra.mrb[0].mxu0 %v163
  %v249 = vpop.f32.mrb[0].mxu0
  %v250 = vadd.f32 %v64, %v249
  %v251 = vpop.f32.mrb[0].mxu0
  %v252 = vpop.f32.mrb[0].mxu0
  %v253 = vadd.f32 %v64, %v252
  %v254 = vpop.f32.mrb[0].mxu0
  %255 = vmatprep.mubr.bf16.mxu0 0
  %256 = vmatmul.mubr.bf16.gmra.mrb[0].mxu0 %v166
  %v257 = vpop.f32.mrb[0].mxu0
  %v258 = vadd.f32 %v64, %v257
  %v259 = vpop.f32.mrb[0].mxu0
  %v260 = vpop.f32.mrb[0].mxu0
  %v261 = vadd.f32 %v64, %v260
  %v262 = vpop.f32.mrb[0].mxu0
  %263 = vmatprep.mubr.bf16.mxu0 0
  %264 = vmatmul.mubr.bf16.gmra.mrb[0].mxu0 %v169
  %v265 = vpop.f32.mrb[0].mxu0
  %v266 = vadd.f32 %v64, %v265
  %v267 = vpop.f32.mrb[0].mxu0
  %v268 = vpop.f32.mrb[0].mxu0
  %v269 = vadd.f32 %v64, %v268
  %v270 = vpop.f32.mrb[0].mxu0
  %271 = vmatprep.mubr.bf16.mxu0 0
  %272 = vmatmul.mubr.bf16.gmra.mrb[0].mxu0 %v172
  %v273 = vpop.f32.mrb[0].mxu0
  %v274 = vadd.f32 %v64, %v273
  %v275 = vpop.f32.mrb[0].mxu0
  %v276 = vpop.f32.mrb[0].mxu0
  %v277 = vadd.f32 %v64, %v276
  %v278 = vpop.f32.mrb[0].mxu0
  %279 = vmatprep.mubr.bf16.mxu0 0
  %280 = vmatmul.mubr.bf16.gmra.mrb[0].mxu0 %v175
  %v281 = vpop.f32.mrb[0].mxu0
  %v282 = vadd.f32 %v64, %v281
  %v283 = vpop.f32.mrb[0].mxu0
  %v284 = vpop.f32.mrb[0].mxu0
  %v285 = vadd.f32 %v64, %v284
  %v286 = vpop.f32.mrb[0].mxu0
  %287 = vmatprep.mubr.bf16.mxu0 0
  %288 = vmatmul.mubr.bf16.gmra.mrb[0].mxu0 %v178
  %v289 = vpop.f32.mrb[0].mxu0
  %v290 = vadd.f32 %v64, %v289
  %v291 = vpop.f32.mrb[0].mxu0
  %v292 = vpop.f32.mrb[0].mxu0
  %v293 = vadd.f32 %v64, %v292
  %v294 = vpop.f32.mrb[0].mxu0
  %295 = vmatprep.mubr.bf16.mxu0 0
  %296 = vmatmul.mubr.bf16.gmra.mrb[0].mxu0 %v181
  %v297 = vpop.f32.mrb[0].mxu0
  %v298 = vadd.f32 %v64, %v297
  %v299 = vpop.f32.mrb[0].mxu0
  %v300 = vpop.f32.mrb[0].mxu0
  %v301 = vadd.f32 %v64, %v300
  %v302 = vpop.f32.mrb[0].mxu0
  %303 = vmatprep.mubr.bf16.mxu0 0
  %304 = vmatmul.mubr.bf16.gmra.mrb[0].mxu0 %v184
  %v305 = vpop.f32.mrb[0].mxu0
  %v306 = vadd.f32 %v64, %v305
  %v307 = vpop.f32.mrb[0].mxu0
  %v308 = vpop.f32.mrb[0].mxu0
  %v309 = vadd.f32 %v64, %v308
  %v310 = vpop.f32.mrb[0].mxu0
  %311 = vmatprep.mubr.bf16.mxu0 0
  %312 = vmatmul.mubr.bf16.gmra.mrb[0].mxu0 %v187
  %v313 = vpop.f32.mrb[0].mxu0
  %v314 = vadd.f32 %v64, %v313
  %v315 = vpop.f32.mrb[0].mxu0
  %v316 = vpop.f32.mrb[0].mxu0
  %v317 = vadd.f32 %v64, %v316
  %v318 = vpop.f32.mrb[0].mxu0
  %319 = vmatprep.mubr.bf16.mxu0 0
  %320 = vmatmul.mubr.bf16.gmra.mrb[0].mxu0 %v190
  %v321 = vpop.f32.mrb[0].mxu0
  %v322 = vadd.f32 %v64, %v321
  %v323 = vpop.f32.mrb[0].mxu0
  %v324 = vpop.f32.mrb[0].mxu0
  %v325 = vadd.f32 %v64, %v324
  %v326 = vpop.f32.mrb[0].mxu0
  %327 = vmatprep.mubr.bf16.mxu0 0
  %328 = vmatmul.mubr.bf16.gmra.mrb[0].mxu0 %v193
  %v329 = vpop.f32.mrb[0].mxu0
  %v330 = vadd.f32 %v64, %v329
  %v331 = vpop.f32.mrb[0].mxu0
  %v332 = vpop.f32.mrb[0].mxu0
  %v333 = vadd.f32 %v64, %v332
  %v334 = vpop.f32.mrb[0].mxu0
  %335 = vmatprep.mubr.bf16.mxu0 0
  %336 = vmatmul.mubr.bf16.gmra.mrb[0].mxu0 %v196
  %v337 = vpop.f32.mrb[0].mxu0
  %v338 = vadd.f32 %v64, %v337
  %v339 = vpop.f32.mrb[0].mxu0
  %v340 = vpop.f32.mrb[0].mxu0
  %v341 = vadd.f32 %v64, %v340
  %v342 = vpop.f32.mrb[0].mxu0
  %343 = vmatprep.mubr.bf16.mxu0 0
  %344 = vmatmul.mubr.bf16.gmra.mrb[0].mxu0 %v199
  %v345 = vpop.f32.mrb[0].mxu0
  %v346 = vadd.f32 %v64, %v345
  %v347 = vpop.f32.mrb[0].mxu0
  %v348 = vpop.f32.mrb[0].mxu0
  %v349 = vadd.f32 %v64, %v348
  %v350 = vpop.f32.mrb[0].mxu0
  %351 = vmatprep.mubr.bf16.mxu0 0
  %352 = vmatmul.mubr.bf16.gmra.mrb[0].mxu0 %v202
  %v353 = vpop.f32.mrb[0].mxu0
  %v354 = vadd.f32 %v64, %v353
  %v355 = vpop.f32.mrb[0].mxu0
  %v356 = vpop.f32.mrb[0].mxu0
  %v357 = vadd.f32 %v64, %v356
  %v358 = vpop.f32.mrb[0].mxu0
  %359 = vmatprep.mubr.bf16.mxu0 0
  %360 = vmatmul.mubr.bf16.gmra.mrb[0].mxu0 %v205
  %v361 = vpop.f32.mrb[0].mxu0
  %v362 = vadd.f32 %v64, %v361
  %v363 = vpop.f32.mrb[0].mxu0
  %v364 = vpop.f32.mrb[0].mxu0
  %v365 = vadd.f32 %v64, %v364
  %v366 = vpop.f32.mrb[0].mxu0
  %367 = vdwg.mxu0
  %v368 = vmax.f32 %v242, 0.0
  %v369 = vmax.f32 %v245, 0.0
  %v370 = vmax.f32 %v250, 0.0
  %v371 = vmax.f32 %v253, 0.0
  %v372 = vmax.f32 %v258, 0.0
  %v373 = vmax.f32 %v261, 0.0
  %v374 = vmax.f32 %v266, 0.0
  %v375 = vmax.f32 %v269, 0.0
  %v376 = vmax.f32 %v274, 0.0
  %v377 = vmax.f32 %v277, 0.0
  %v378 = vmax.f32 %v282, 0.0
  %v379 = vmax.f32 %v285, 0.0
  %v380 = vmax.f32 %v290, 0.0
  %v381 = vmax.f32 %v293, 0.0
  %v382 = vmax.f32 %v298, 0.0
  %v383 = vmax.f32 %v301, 0.0
  %v384 = vmax.f32 %v306, 0.0
  %v385 = vmax.f32 %v309, 0.0
  %v386 = vmax.f32 %v314, 0.0
  %v387 = vmax.f32 %v317, 0.0
  %v388 = vmax.f32 %v322, 0.0
  %v389 = vmax.f32 %v325, 0.0
  %v390 = vmax.f32 %v330, 0.0
  %v391 = vmax.f32 %v333, 0.0
  %v392 = vmax.f32 %v338, 0.0
  %v393 = vmax.f32 %v341, 0.0
  %v394 = vmax.f32 %v346, 0.0
  %v395 = vmax.f32 %v349, 0.0
  %v396 = vmax.f32 %v354, 0.0
  %v397 = vmax.f32 %v357, 0.0
  %v398 = vmax.f32 %v362, 0.0
  %v399 = vmax.f32 %v365, 0.0
  %400 = vst.msk [vmem:[%s5] sm:$0xff] %vm158, %v368
  %401 = vst.msk [vmem:[%s5 + $0x8] sm:$0xff] %vm158, %v369
  %402 = vst.msk [vmem:[%s5 + $0x10] sm:$0xff] %vm158, %v370
  %403 = vst.msk [vmem:[%s5 + $0x18] sm:$0xff] %vm158, %v371
  %404 = vst.msk [vmem:[%s5 + $0x20] sm:$0xff] %vm158, %v372
  %405 = vst.msk [vmem:[%s5 + $0x28] sm:$0xff] %vm158, %v373
  %406 = vst.msk [vmem:[%s5 + $0x30] sm:$0xff] %vm158, %v374
  %407 = vst.msk [vmem:[%s5 + $0x38] sm:$0xff] %vm158, %v375
  %408 = vst.msk [vmem:[%s5 + $0x40] sm:$0xff] %vm158, %v376
  %409 = vst.msk [vmem:[%s5 + $0x48] sm:$0xff] %vm158, %v377
  %410 = vst.msk [vmem:[%s5 + $0x50] sm:$0xff] %vm158, %v378
  %411 = vst.msk [vmem:[%s5 + $0x58] sm:$0xff] %vm158, %v379
  %412 = vst.msk [vmem:[%s5 + $0x60] sm:$0xff] %vm158, %v380
  %413 = vst.msk [vmem:[%s5 + $0x68] sm:$0xff] %vm158, %v381
  %414 = vst.msk [vmem:[%s5 + $0x70] sm:$0xff] %vm158, %v382
  %415 = vst.msk [vmem:[%s5 + $0x78] sm:$0xff] %vm158, %v383
  %416 = vst.msk [vmem:[%s5 + $0x80] sm:$0xff] %vm158, %v384
  %417 = vst.msk [vmem:[%s5 + $0x88] sm:$0xff] %vm158, %v385
  %418 = vst.msk [vmem:[%s5 + $0x90] sm:$0xff] %vm158, %v386
  %419 = vst.msk [vmem:[%s5 + $0x98] sm:$0xff] %vm158, %v387
  %420 = vst.msk [vmem:[%s5 + $0xa0] sm:$0xff] %vm158, %v388
  %421 = vst.msk [vmem:[%s5 + $0xa8] sm:$0xff] %vm158, %v389
  %422 = vst.msk [vmem:[%s5 + $0xb0] sm:$0xff] %vm158, %v390
  %423 = vst.msk [vmem:[%s5 + $0xb8] sm:$0xff] %vm158, %v391
  %424 = vst.msk [vmem:[%s5 + $0xc0] sm:$0xff] %vm158, %v392
  %425 = vst.msk [vmem:[%s5 + $0xc8] sm:$0xff] %vm158, %v393
  %426 = vst.msk [vmem:[%s5 + $0xd0] sm:$0xff] %vm158, %v394
  %427 = vst.msk [vmem:[%s5 + $0xd8] sm:$0xff] %vm158, %v395
  %428 = vst.msk [vmem:[%s5 + $0xe0] sm:$0xff] %vm158, %v396
  %429 = vst.msk [vmem:[%s5 + $0xe8] sm:$0xff] %vm158, %v397
  %430 = vst.msk [vmem:[%s5 + $0xf0] sm:$0xff] %vm158, %v398
  %431 = vst.msk [vmem:[%s5 + $0xf8] sm:$0xff] %vm158, %v399
  %v432 = vpack.c.bf16 %v369, %v368
  %v433 = vpack.c.bf16 %v371, %v370
  %v434 = vpack.c.bf16 %v373, %v372
  %v435 = vpack.c.bf16 %v375, %v374
  %v436 = vpack.c.bf16 %v377, %v376
  %v437 = vpack.c.bf16 %v379, %v378
  %v438 = vpack.c.bf16 %v381, %v380
  %v439 = vpack.c.bf16 %v383, %v382
  %v440 = vpack.c.bf16 %v385, %v384
  %v441 = vpack.c.bf16 %v387, %v386
  %v442 = vpack.c.bf16 %v389, %v388
  %v443 = vpack.c.bf16 %v391, %v390
  %v444 = vpack.c.bf16 %v393, %v392
  %v445 = vpack.c.bf16 %v395, %v394
  %v446 = vpack.c.bf16 %v397, %v396
  %v447 = vpack.c.bf16 %v399, %v398
  %v448 = vld [vmem:[%s3] sm:$0xf]
  %v449 = vld [vmem:[%s3 + $0x4] sm:$0xf]
  %v450 = vld [vmem:[%s3 + $0x8] sm:$0xf]
  %v451 = vld [vmem:[%s3 + $0xc] sm:$0xf]
  %v452 = vld [vmem:[%s4] sm:$0x1]
  %v454 = vlaneseq
  %v455 = vshrl.u32 %v454, 7
  %v456 = vsub.s32 0, %v455
  %v457 = vrot.slane %v452, %v456
  %v463 = vunpack.c.l.b16 %v448
  %v464 = vunpack.c.l.b16 %v449
  %v465 = vunpack.c.l.b16 %v450
  %v466 = vunpack.c.l.b16 %v451
  %v467 = vpack.c.b16 %v464, %v463
  %v468 = vpack.c.b16 %v466, %v465
  %v472 = vsel %vm158, %v432, 0
  %v475 = vsel %vm158, %v433, 0
  %v478 = vsel %vm158, %v434, 0
  %v481 = vsel %vm158, %v435, 0
  %v484 = vsel %vm158, %v436, 0
  %v487 = vsel %vm158, %v437, 0
  %v490 = vsel %vm158, %v438, 0
  %v493 = vsel %vm158, %v439, 0
  %v496 = vsel %vm158, %v440, 0
  %v499 = vsel %vm158, %v441, 0
  %v502 = vsel %vm158, %v442, 0
  %v505 = vsel %vm158, %v443, 0
  %v508 = vsel %vm158, %v444, 0
  %v511 = vsel %vm158, %v445, 0
  %v514 = vsel %vm158, %v446, 0
  %v517 = vsel %vm158, %v447, 0
  %519 = vmatprep.subr.bf16.mxu0 0
  %520 = vmatpush1.bf16.msra.mxu0 %v467
  %521 = vmatprep.subr.bf16.mxu0 0
  %522 = vmatpush1.bf16.msra.mxu0 %v468
  %523 = vmatprep.subr.bf16.mxu0 0
  %524 = vmatpush1.bf16.msra.mxu0 0
  %525 = vmatprep.subr.bf16.mxu0 0
  %526 = vmatpush1.bf16.msra.mxu0 0
  %527 = vmatprep.subr.bf16.mxu0 0
  %528 = vmatpush1.bf16.msra.mxu0 0
  %529 = vmatprep.subr.bf16.mxu0 0
  %530 = vmatpush1.bf16.msra.mxu0 0
  %531 = vmatprep.subr.bf16.mxu0 0
  %532 = vmatpush1.bf16.msra.mxu0 0
  %533 = vmatprep.subr.bf16.mxu0 0
  %534 = vmatpush1.bf16.msra.mxu0 0
  %535 = vmatprep.subr.bf16.mxu0 0
  %536 = vmatpush1.bf16.msra.mxu0 0
  %537 = vmatprep.subr.bf16.mxu0 0
  %538 = vmatpush1.bf16.msra.mxu0 0
  %539 = vmatprep.subr.bf16.mxu0 0
  %540 = vmatpush1.bf16.msra.mxu0 0
  %541 = vmatprep.subr.bf16.mxu0 0
  %542 = vmatpush1.bf16.msra.mxu0 0
  %543 = vmatprep.subr.bf16.mxu0 0
  %544 = vmatpush1.bf16.msra.mxu0 0
  %545 = vmatprep.subr.bf16.mxu0 0
  %546 = vmatpush1.bf16.msra.mxu0 0
  %547 = vmatprep.subr.bf16.mxu0 0
  %548 = vmatpush1.bf16.msra.mxu0 0
  %549 = vmatprep.subr.bf16.mxu0 0
  %550 = vmatpush1.bf16.msra.mxu0 0
  %551 = vmatprep.mubr.bf16.mxu0 0
  %552 = vmatmul.mubr.bf16.gmra.mrb[0].mxu0 %v472
  %v553 = vpop.f32.mrb[0].mxu0
  %v554 = vadd.f32 %v457, %v553
  %v555 = vpop.f32.mrb[0].mxu0
  %v556 = vpop.f32.mrb[0].mxu0
  %v557 = vadd.f32 %v457, %v556
  %v558 = vpop.f32.mrb[0].mxu0
  %559 = vmatprep.mubr.bf16.mxu0 0
  %560 = vmatmul.mubr.bf16.gmra.mrb[0].mxu0 %v475
  %v561 = vpop.f32.mrb[0].mxu0
  %v562 = vadd.f32 %v457, %v561
  %v563 = vpop.f32.mrb[0].mxu0
  %v564 = vpop.f32.mrb[0].mxu0
  %v565 = vadd.f32 %v457, %v564
  %v566 = vpop.f32.mrb[0].mxu0
  %567 = vmatprep.mubr.bf16.mxu0 0
  %568 = vmatmul.mubr.bf16.gmra.mrb[0].mxu0 %v478
  %v569 = vpop.f32.mrb[0].mxu0
  %v570 = vadd.f32 %v457, %v569
  %v571 = vpop.f32.mrb[0].mxu0
  %v572 = vpop.f32.mrb[0].mxu0
  %v573 = vadd.f32 %v457, %v572
  %v574 = vpop.f32.mrb[0].mxu0
  %575 = vmatprep.mubr.bf16.mxu0 0
  %576 = vmatmul.mubr.bf16.gmra.mrb[0].mxu0 %v481
  %v577 = vpop.f32.mrb[0].mxu0
  %v578 = vadd.f32 %v457, %v577
  %v579 = vpop.f32.mrb[0].mxu0
  %v580 = vpop.f32.mrb[0].mxu0
  %v581 = vadd.f32 %v457, %v580
  %v582 = vpop.f32.mrb[0].mxu0
  %583 = vmatprep.mubr.bf16.mxu0 0
  %584 = vmatmul.mubr.bf16.gmra.mrb[0].mxu0 %v484
  %v585 = vpop.f32.mrb[0].mxu0
  %v586 = vadd.f32 %v457, %v585
  %v587 = vpop.f32.mrb[0].mxu0
  %v588 = vpop.f32.mrb[0].mxu0
  %v589 = vadd.f32 %v457, %v588
  %v590 = vpop.f32.mrb[0].mxu0
  %591 = vmatprep.mubr.bf16.mxu0 0
  %592 = vmatmul.mubr.bf16.gmra.mrb[0].mxu0 %v487
  %v593 = vpop.f32.mrb[0].mxu0
  %v594 = vadd.f32 %v457, %v593
  %v595 = vpop.f32.mrb[0].mxu0
  %v596 = vpop.f32.mrb[0].mxu0
  %v597 = vadd.f32 %v457, %v596
  %v598 = vpop.f32.mrb[0].mxu0
  %599 = vmatprep.mubr.bf16.mxu0 0
  %600 = vmatmul.mubr.bf16.gmra.mrb[0].mxu0 %v490
  %v601 = vpop.f32.mrb[0].mxu0
  %v602 = vadd.f32 %v457, %v601
  %v603 = vpop.f32.mrb[0].mxu0
  %v604 = vpop.f32.mrb[0].mxu0
  %v605 = vadd.f32 %v457, %v604
  %v606 = vpop.f32.mrb[0].mxu0
  %607 = vmatprep.mubr.bf16.mxu0 0
  %608 = vmatmul.mubr.bf16.gmra.mrb[0].mxu0 %v493
  %v609 = vpop.f32.mrb[0].mxu0
  %v610 = vadd.f32 %v457, %v609
  %v611 = vpop.f32.mrb[0].mxu0
  %v612 = vpop.f32.mrb[0].mxu0
  %v613 = vadd.f32 %v457, %v612
  %v614 = vpop.f32.mrb[0].mxu0
  %615 = vmatprep.mubr.bf16.mxu0 0
  %616 = vmatmul.mubr.bf16.gmra.mrb[0].mxu0 %v496
  %v617 = vpop.f32.mrb[0].mxu0
  %v618 = vadd.f32 %v457, %v617
  %v619 = vpop.f32.mrb[0].mxu0
  %v620 = vpop.f32.mrb[0].mxu0
  %v621 = vadd.f32 %v457, %v620
  %v622 = vpop.f32.mrb[0].mxu0
  %623 = vmatprep.mubr.bf16.mxu0 0
  %624 = vmatmul.mubr.bf16.gmra.mrb[0].mxu0 %v499
  %v625 = vpop.f32.mrb[0].mxu0
  %v626 = vadd.f32 %v457, %v625
  %v627 = vpop.f32.mrb[0].mxu0
  %v628 = vpop.f32.mrb[0].mxu0
  %v629 = vadd.f32 %v457, %v628
  %v630 = vpop.f32.mrb[0].mxu0
  %631 = vmatprep.mubr.bf16.mxu0 0
  %632 = vmatmul.mubr.bf16.gmra.mrb[0].mxu0 %v502
  %v633 = vpop.f32.mrb[0].mxu0
  %v634 = vadd.f32 %v457, %v633
  %v635 = vpop.f32.mrb[0].mxu0
  %v636 = vpop.f32.mrb[0].mxu0
  %v637 = vadd.f32 %v457, %v636
  %v638 = vpop.f32.mrb[0].mxu0
  %639 = vmatprep.mubr.bf16.mxu0 0
  %640 = vmatmul.mubr.bf16.gmra.mrb[0].mxu0 %v505
  %v641 = vpop.f32.mrb[0].mxu0
  %v642 = vadd.f32 %v457, %v641
  %v643 = vpop.f32.mrb[0].mxu0
  %v644 = vpop.f32.mrb[0].mxu0
  %v645 = vadd.f32 %v457, %v644
  %v646 = vpop.f32.mrb[0].mxu0
  %647 = vmatprep.mubr.bf16.mxu0 0
  %648 = vmatmul.mubr.bf16.gmra.mrb[0].mxu0 %v508
  %v649 = vpop.f32.mrb[0].mxu0
  %v650 = vadd.f32 %v457, %v649
  %v651 = vpop.f32.mrb[0].mxu0
  %v652 = vpop.f32.mrb[0].mxu0
  %v653 = vadd.f32 %v457, %v652
  %v654 = vpop.f32.mrb[0].mxu0
  %655 = vmatprep.mubr.bf16.mxu0 0
  %656 = vmatmul.mubr.bf16.gmra.mrb[0].mxu0 %v511
  %v657 = vpop.f32.mrb[0].mxu0
  %v658 = vadd.f32 %v457, %v657
  %v659 = vpop.f32.mrb[0].mxu0
  %v660 = vpop.f32.mrb[0].mxu0
  %v661 = vadd.f32 %v457, %v660
  %v662 = vpop.f32.mrb[0].mxu0
  %663 = vmatprep.mubr.bf16.mxu0 0
  %664 = vmatmul.mubr.bf16.gmra.mrb[0].mxu0 %v514
  %v665 = vpop.f32.mrb[0].mxu0
  %v666 = vadd.f32 %v457, %v665
  %v667 = vpop.f32.mrb[0].mxu0
  %v668 = vpop.f32.mrb[0].mxu0
  %v669 = vadd.f32 %v457, %v668
  %v670 = vpop.f32.mrb[0].mxu0
  %671 = vmatprep.mubr.bf16.mxu0 0
  %672 = vmatmul.mubr.bf16.gmra.mrb[0].mxu0 %v517
  %v673 = vpop.f32.mrb[0].mxu0
  %v674 = vadd.f32 %v457, %v673
  %v675 = vpop.f32.mrb[0].mxu0
  %v676 = vpop.f32.mrb[0].mxu0
  %v677 = vadd.f32 %v457, %v676
  %v678 = vpop.f32.mrb[0].mxu0
  %679 = vdwg.mxu0
  %vm680 = vcmask 64512
  %681 = vst.msk [vmem:[%s6] sm:$0xff] %vm680, %v554
  %682 = vst.msk [vmem:[%s6 + $0x8] sm:$0xff] %vm680, %v557
  %683 = vst.msk [vmem:[%s6 + $0x10] sm:$0xff] %vm680, %v562
  %684 = vst.msk [vmem:[%s6 + $0x18] sm:$0xff] %vm680, %v565
  %685 = vst.msk [vmem:[%s6 + $0x20] sm:$0xff] %vm680, %v570
  %686 = vst.msk [vmem:[%s6 + $0x28] sm:$0xff] %vm680, %v573
  %687 = vst.msk [vmem:[%s6 + $0x30] sm:$0xff] %vm680, %v578
  %688 = vst.msk [vmem:[%s6 + $0x38] sm:$0xff] %vm680, %v581
  %689 = vst.msk [vmem:[%s6 + $0x40] sm:$0xff] %vm680, %v586
  %690 = vst.msk [vmem:[%s6 + $0x48] sm:$0xff] %vm680, %v589
  %691 = vst.msk [vmem:[%s6 + $0x50] sm:$0xff] %vm680, %v594
  %692 = vst.msk [vmem:[%s6 + $0x58] sm:$0xff] %vm680, %v597
  %693 = vst.msk [vmem:[%s6 + $0x60] sm:$0xff] %vm680, %v602
  %694 = vst.msk [vmem:[%s6 + $0x68] sm:$0xff] %vm680, %v605
  %695 = vst.msk [vmem:[%s6 + $0x70] sm:$0xff] %vm680, %v610
  %696 = vst.msk [vmem:[%s6 + $0x78] sm:$0xff] %vm680, %v613
  %697 = vst.msk [vmem:[%s6 + $0x80] sm:$0xff] %vm680, %v618
  %698 = vst.msk [vmem:[%s6 + $0x88] sm:$0xff] %vm680, %v621
  %699 = vst.msk [vmem:[%s6 + $0x90] sm:$0xff] %vm680, %v626
  %700 = vst.msk [vmem:[%s6 + $0x98] sm:$0xff] %vm680, %v629
  %701 = vst.msk [vmem:[%s6 + $0xa0] sm:$0xff] %vm680, %v634
  %702 = vst.msk [vmem:[%s6 + $0xa8] sm:$0xff] %vm680, %v637
  %703 = vst.msk [vmem:[%s6 + $0xb0] sm:$0xff] %vm680, %v642
  %704 = vst.msk [vmem:[%s6 + $0xb8] sm:$0xff] %vm680, %v645
  %705 = vst.msk [vmem:[%s6 + $0xc0] sm:$0xff] %vm680, %v650
  %706 = vst.msk [vmem:[%s6 + $0xc8] sm:$0xff] %vm680, %v653
  %707 = vst.msk [vmem:[%s6 + $0xd0] sm:$0xff] %vm680, %v658
  %708 = vst.msk [vmem:[%s6 + $0xd8] sm:$0xff] %vm680, %v661
  %709 = vst.msk [vmem:[%s6 + $0xe0] sm:$0xff] %vm680, %v666
  %710 = vst.msk [vmem:[%s6 + $0xe8] sm:$0xff] %vm680, %v669
  %711 = vst.msk [vmem:[%s6 + $0xf0] sm:$0xff] %vm680, %v674
  %712 = vst.msk [vmem:[%s6 + $0xf8] sm:$0xff] %vm680, %v677
  // Predicated region
  $region22: #{mask_rcnn_forward.2} parent=0 // pred_check
    _
  $region23: #{mask_rcnn_forward.2} parent=0 // pred_check_branch
    %714 = sbr.rel (0) target = $region25
  $region24: #{mask_rcnn_forward.2} parent=0 // pred_region
    _
  $region25: #{mask_rcnn_forward.2} parent=0 // pred_fallthru
    _
  // Predicated region
  $region26: #{mask_rcnn_forward.2} parent=0 // pred_check
    _
  $region27: #{mask_rcnn_forward.2} parent=0 // pred_check_branch
    %716 = sbr.rel (0) target = $region29
  $region28: #{mask_rcnn_forward.2} parent=0 // pred_region
    _
  $region29: #{mask_rcnn_forward.2} parent=0 // pred_fallthru
    _
  // Predicated region
  $region30: #{mask_rcnn_forward.2} parent=0 // pred_check
    _
  $region31: #{mask_rcnn_forward.2} parent=0 // pred_check_branch
    %718 = sbr.rel (0) target = $region33
  $region32: #{mask_rcnn_forward.2} parent=0 // pred_region
    _
  $region33: #{mask_rcnn_forward.2} parent=0 // pred_fallthru
    _
  // Predicated region
  $region34: #{mask_rcnn_forward.2} parent=0 // pred_check
    _
  $region35: #{mask_rcnn_forward.2} parent=0 // pred_check_branch
    %720 = sbr.rel (0) target = $region37
  $region36: #{mask_rcnn_forward.2} parent=0 // pred_region
    _
  $region37: #{mask_rcnn_forward.2} parent=0 // pred_fallthru
    _

// kernel: mask_rcnn_forward.3
$region0: #{mask_rcnn_forward.3}
  #allocation0 [shape = 'u32[]', space=smem, size = 0x4, offset = 0x4, fixed_abs, tag = 'smem constant byte address 0x4 - core index']
  #allocation1 [shape = 'u32[144,128]{1,0:T(1,128)}', space=vmem, size = 0x12000, scoped, tag = 'internal scratch']
  %s0 = inlined_call_operand.vmem [shape: bf16[8,512], index: 0, kind: input, shape index: {}]
  %s1 = inlined_call_operand.vmem [shape: bf16[128,32], index: 1, kind: input, shape index: {}]
  %s2 = inlined_call_operand.vmem [shape: bf16[512,64], index: 2, kind: input, shape index: {}]
  %s3 = inlined_call_operand.vmem [shape: f32[1,64], index: 3, kind: input, shape index: {}]
  %s4 = inlined_call_operand.vmem [shape: bf16[64,40], index: 4, kind: input, shape index: {}]
  %s5 = inlined_call_operand.vmem [shape: f32[1,40], index: 5, kind: input, shape index: {}]
  %s6 = inlined_call_operand.vmem [shape: bf16[32,32], index: 6, kind: input, shape index: {}]
  %s7 = inlined_call_operand.vmem [shape: f32[1,32], index: 7, kind: input, shape index: {}]
  %s8 = inlined_call_operand.vmem [shape: bf16[32,8], index: 8, kind: input, shape index: {}]
  %s9 = inlined_call_operand.vmem [shape: f32[1,8], index: 9, kind: input, shape index: {}]
  %s10 = inlined_call_operand.vmem [shape: f32[8,40], index: 10, kind: output, shape index: {0}]
  %s11 = inlined_call_operand.vmem [shape: f32[128,8], index: 11, kind: output, shape index: {1}]
  %12 = xla_tuple %s10, %s11
  %s13 = sld [smem:[#allocation0]]
  $region58: #{mask_rcnn_forward.3} parent=0
    _
  %s15 = ssub.s32 1, %s13
  %s16 = scalar_select 0, %s15, %s13
  // Predicated region
  $region2: #{mask_rcnn_forward.3} parent=0 // pred_check
    _
  $region3: #{mask_rcnn_forward.3} parent=0 // pred_check_branch
    %18 = sbr.rel (0) target = $region5
  $region4: #{mask_rcnn_forward.3} parent=0 // pred_region
    _
  $region5: #{mask_rcnn_forward.3} parent=0 // pred_fallthru
    _
  // Predicated region
  $region6: #{mask_rcnn_forward.3} parent=0 // pred_check
    _
  $region7: #{mask_rcnn_forward.3} parent=0 // pred_check_branch
    %20 = sbr.rel (0) target = $region9
  $region8: #{mask_rcnn_forward.3} parent=0 // pred_region
    _
  $region9: #{mask_rcnn_forward.3} parent=0 // pred_fallthru
    _
  // Predicated region
  $region10: #{mask_rcnn_forward.3} parent=0 // pred_check
    _
  $region11: #{mask_rcnn_forward.3} parent=0 // pred_check_branch
    %22 = sbr.rel (0) target = $region13
  $region12: #{mask_rcnn_forward.3} parent=0 // pred_region
    _
  $region13: #{mask_rcnn_forward.3} parent=0 // pred_fallthru
    _
  // Predicated region
  $region14: #{mask_rcnn_forward.3} parent=0 // pred_check
    _
  $region15: #{mask_rcnn_forward.3} parent=0 // pred_check_branch
    %24 = sbr.rel (0) target = $region17
  $region16: #{mask_rcnn_forward.3} parent=0 // pred_region
    _
  $region17: #{mask_rcnn_forward.3} parent=0 // pred_fallthru
    _
  // Predicated region
  $region18: #{mask_rcnn_forward.3} parent=0 // pred_check
    _
  $region19: #{mask_rcnn_forward.3} parent=0 // pred_check_branch
    %26 = sbr.rel (0) target = $region21
  $region20: #{mask_rcnn_forward.3} parent=0 // pred_region
    _
  $region21: #{mask_rcnn_forward.3} parent=0 // pred_fallthru
    _
  // Predicated region
  $region22: #{mask_rcnn_forward.3} parent=0 // pred_check
    _
  $region23: #{mask_rcnn_forward.3} parent=0 // pred_check_branch
    %28 = sbr.rel (0) target = $region25
  $region24: #{mask_rcnn_forward.3} parent=0 // pred_region
    _
  $region25: #{mask_rcnn_forward.3} parent=0 // pred_fallthru
    _
  // Predicated region
  $region26: #{mask_rcnn_forward.3} parent=0 // pred_check
    _
  $region27: #{mask_rcnn_forward.3} parent=0 // pred_check_branch
    %30 = sbr.rel (0) target = $region29
  $region28: #{mask_rcnn_forward.3} parent=0 // pred_region
    _
  $region29: #{mask_rcnn_forward.3} parent=0 // pred_fallthru
    _
  // Predicated region
  $region30: #{mask_rcnn_forward.3} parent=0 // pred_check
    _
  $region31: #{mask_rcnn_forward.3} parent=0 // pred_check_branch
    %32 = sbr.rel (0) target = $region33
  $region32: #{mask_rcnn_forward.3} parent=0 // pred_region
    _
  $region33: #{mask_rcnn_forward.3} parent=0 // pred_fallthru
    _
  // Predicated region
  $region34: #{mask_rcnn_forward.3} parent=0 // pred_check
    _
  $region35: #{mask_rcnn_forward.3} parent=0 // pred_check_branch
    %34 = sbr.rel (0) target = $region37
  $region36: #{mask_rcnn_forward.3} parent=0 // pred_region
    _
  $region37: #{mask_rcnn_forward.3} parent=0 // pred_fallthru
    _
  // Predicated region
  $region38: #{mask_rcnn_forward.3} parent=0 // pred_check
    _
  $region39: #{mask_rcnn_forward.3} parent=0 // pred_check_branch
    %36 = sbr.rel (0) target = $region41
  $region40: #{mask_rcnn_forward.3} parent=0 // pred_region
    _
  $region41: #{mask_rcnn_forward.3} parent=0 // pred_fallthru
    _
  %v38 = vld [vmem:[%s0] sm:$0xff]
  %v39 = vld [vmem:[%s0 + $0x8] sm:$0xff]
  %v40 = vld [vmem:[%s2] sm:$0xf]
  %v41 = vld [vmem:[%s2 + $0x4] sm:$0xf]
  %v42 = vld [vmem:[%s2 + $0x8] sm:$0xf]
  %v43 = vld [vmem:[%s2 + $0xc] sm:$0xf]
  %v44 = vld [vmem:[%s2 + $0x10] sm:$0xf]
  %v45 = vld [vmem:[%s2 + $0x14] sm:$0xf]
  %v46 = vld [vmem:[%s2 + $0x18] sm:$0xf]
  %v47 = vld [vmem:[%s2 + $0x1c] sm:$0xf]
  %v48 = vld [vmem:[%s2 + $0x20] sm:$0xf]
  %v49 = vld [vmem:[%s2 + $0x24] sm:$0xf]
  %v50 = vld [vmem:[%s2 + $0x28] sm:$0xf]
  %v51 = vld [vmem:[%s2 + $0x2c] sm:$0xf]
  %v52 = vld [vmem:[%s2 + $0x30] sm:$0xf]
  %v53 = vld [vmem:[%s2 + $0x34] sm:$0xf]
  %v54 = vld [vmem:[%s2 + $0x38] sm:$0xf]
  %v55 = vld [vmem:[%s2 + $0x3c] sm:$0xf]
  %v56 = vld [vmem:[%s2 + $0x40] sm:$0xf]
  %v57 = vld [vmem:[%s2 + $0x44] sm:$0xf]
  %v58 = vld [vmem:[%s2 + $0x48] sm:$0xf]
  %v59 = vld [vmem:[%s2 + $0x4c] sm:$0xf]
  %v60 = vld [vmem:[%s2 + $0x50] sm:$0xf]
  %v61 = vld [vmem:[%s2 + $0x54] sm:$0xf]
  %v62 = vld [vmem:[%s2 + $0x58] sm:$0xf]
  %v63 = vld [vmem:[%s2 + $0x5c] sm:$0xf]
  %v64 = vld [vmem:[%s2 + $0x60] sm:$0xf]
  %v65 = vld [vmem:[%s2 + $0x64] sm:$0xf]
  %v66 = vld [vmem:[%s2 + $0x68] sm:$0xf]
  %v67 = vld [vmem:[%s2 + $0x6c] sm:$0xf]
  %v68 = vld [vmem:[%s2 + $0x70] sm:$0xf]
  %v69 = vld [vmem:[%s2 + $0x74] sm:$0xf]
  %v70 = vld [vmem:[%s2 + $0x78] sm:$0xf]
  %v71 = vld [vmem:[%s2 + $0x7c] sm:$0xf]
  %v72 = vld [vmem:[%s2 + $0x80] sm:$0xf]
  %v73 = vld [vmem:[%s2 + $0x84] sm:$0xf]
  %v74 = vld [vmem:[%s2 + $0x88] sm:$0xf]
  %v75 = vld [vmem:[%s2 + $0x8c] sm:$0xf]
  %v76 = vld [vmem:[%s2 + $0x90] sm:$0xf]
  %v77 = vld [vmem:[%s2 + $0x94] sm:$0xf]
  %v78 = vld [vmem:[%s2 + $0x98] sm:$0xf]
  %v79 = vld [vmem:[%s2 + $0x9c] sm:$0xf]
  %v80 = vld [vmem:[%s2 + $0xa0] sm:$0xf]
  %v81 = vld [vmem:[%s2 + $0xa4] sm:$0xf]
  %v82 = vld [vmem:[%s2 + $0xa8] sm:$0xf]
  %v83 = vld [vmem:[%s2 + $0xac] sm:$0xf]
  %v84 = vld [vmem:[%s2 + $0xb0] sm:$0xf]
  %v85 = vld [vmem:[%s2 + $0xb4] sm:$0xf]
  %v86 = vld [vmem:[%s2 + $0xb8] sm:$0xf]
  %v87 = vld [vmem:[%s2 + $0xbc] sm:$0xf]
  %v88 = vld [vmem:[%s2 + $0xc0] sm:$0xf]
  %v89 = vld [vmem:[%s2 + $0xc4] sm:$0xf]
  %v90 = vld [vmem:[%s2 + $0xc8] sm:$0xf]
  %v91 = vld [vmem:[%s2 + $0xcc] sm:$0xf]
  %v92 = vld [vmem:[%s2 + $0xd0] sm:$0xf]
  %v93 = vld [vmem:[%s2 + $0xd4] sm:$0xf]
  %v94 = vld [vmem:[%s2 + $0xd8] sm:$0xf]
  %v95 = vld [vmem:[%s2 + $0xdc] sm:$0xf]
  %v96 = vld [vmem:[%s2 + $0xe0] sm:$0xf]
  %v97 = vld [vmem:[%s2 + $0xe4] sm:$0xf]
  %v98 = vld [vmem:[%s2 + $0xe8] sm:$0xf]
  %v99 = vld [vmem:[%s2 + $0xec] sm:$0xf]
  %v100 = vld [vmem:[%s2 + $0xf0] sm:$0xf]
  %v101 = vld [vmem:[%s2 + $0xf4] sm:$0xf]
  %v102 = vld [vmem:[%s2 + $0xf8] sm:$0xf]
  %v103 = vld [vmem:[%s2 + $0xfc] sm:$0xf]
  %v104 = vld [vmem:[%s3] sm:$0x1]
  %v106 = vlaneseq
  %v107 = vshrl.u32 %v106, 7
  %v108 = vsub.s32 0, %v107
  %v109 = vrot.slane %v104, %v108
  %v113 = vunpack.c.l.b16 %v38
  %v114 = vunpack.c.h.b16 %v38
  %v115 = vunpack.c.l.b16 %v39
  %v116 = vunpack.c.h.b16 %v39
  %v117 = vpack.c.b16 %v113, %v113
  %v118 = vpack.c.b16 %v114, %v114
  %v119 = vpack.c.b16 %v115, %v115
  %v120 = vpack.c.b16 %v116, %v116
  %v189 = vunpack.c.l.b16 %v40
  %v190 = vunpack.c.l.b16 %v41
  %v191 = vunpack.c.l.b16 %v42
  %v192 = vunpack.c.l.b16 %v43
  %v193 = vunpack.c.l.b16 %v44
  %v194 = vunpack.c.l.b16 %v45
  %v195 = vunpack.c.l.b16 %v46
  %v196 = vunpack.c.l.b16 %v47
  %v197 = vunpack.c.l.b16 %v48
  %v198 = vunpack.c.l.b16 %v49
  %v199 = vunpack.c.l.b16 %v50
  %v200 = vunpack.c.l.b16 %v51
  %v201 = vunpack.c.l.b16 %v52
  %v202 = vunpack.c.l.b16 %v53
  %v203 = vunpack.c.l.b16 %v54
  %v204 = vunpack.c.l.b16 %v55
  %v205 = vunpack.c.l.b16 %v56
  %v206 = vunpack.c.l.b16 %v57
  %v207 = vunpack.c.l.b16 %v58
  %v208 = vunpack.c.l.b16 %v59
  %v209 = vunpack.c.l.b16 %v60
  %v210 = vunpack.c.l.b16 %v61
  %v211 = vunpack.c.l.b16 %v62
  %v212 = vunpack.c.l.b16 %v63
  %v213 = vunpack.c.l.b16 %v64
  %v214 = vunpack.c.l.b16 %v65
  %v215 = vunpack.c.l.b16 %v66
  %v216 = vunpack.c.l.b16 %v67
  %v217 = vunpack.c.l.b16 %v68
  %v218 = vunpack.c.l.b16 %v69
  %v219 = vunpack.c.l.b16 %v70
  %v220 = vunpack.c.l.b16 %v71
  %v221 = vunpack.c.l.b16 %v72
  %v222 = vunpack.c.l.b16 %v73
  %v223 = vunpack.c.l.b16 %v74
  %v224 = vunpack.c.l.b16 %v75
  %v225 = vunpack.c.l.b16 %v76
  %v226 = vunpack.c.l.b16 %v77
  %v227 = vunpack.c.l.b16 %v78
  %v228 = vunpack.c.l.b16 %v79
  %v229 = vunpack.c.l.b16 %v80
  %v230 = vunpack.c.l.b16 %v81
  %v231 = vunpack.c.l.b16 %v82
  %v232 = vunpack.c.l.b16 %v83
  %v233 = vunpack.c.l.b16 %v84
  %v234 = vunpack.c.l.b16 %v85
  %v235 = vunpack.c.l.b16 %v86
  %v236 = vunpack.c.l.b16 %v87
  %v237 = vunpack.c.l.b16 %v88
  %v238 = vunpack.c.l.b16 %v89
  %v239 = vunpack.c.l.b16 %v90
  %v240 = vunpack.c.l.b16 %v91
  %v241 = vunpack.c.l.b16 %v92
  %v242 = vunpack.c.l.b16 %v93
  %v243 = vunpack.c.l.b16 %v94
  %v244 = vunpack.c.l.b16 %v95
  %v245 = vunpack.c.l.b16 %v96
  %v246 = vunpack.c.l.b16 %v97
  %v247 = vunpack.c.l.b16 %v98
  %v248 = vunpack.c.l.b16 %v99
  %v249 = vunpack.c.l.b16 %v100
  %v250 = vunpack.c.l.b16 %v101
  %v251 = vunpack.c.l.b16 %v102
  %v252 = vunpack.c.l.b16 %v103
  %v253 = vpack.c.b16 %v190, %v189
  %v254 = vpack.c.b16 %v192, %v191
  %v255 = vpack.c.b16 %v194, %v193
  %v256 = vpack.c.b16 %v196, %v195
  %v257 = vpack.c.b16 %v198, %v197
  %v258 = vpack.c.b16 %v200, %v199
  %v259 = vpack.c.b16 %v202, %v201
  %v260 = vpack.c.b16 %v204, %v203
  %v261 = vpack.c.b16 %v206, %v205
  %v262 = vpack.c.b16 %v208, %v207
  %v263 = vpack.c.b16 %v210, %v209
  %v264 = vpack.c.b16 %v212, %v211
  %v265 = vpack.c.b16 %v214, %v213
  %v266 = vpack.c.b16 %v216, %v215
  %v267 = vpack.c.b16 %v218, %v217
  %v268 = vpack.c.b16 %v220, %v219
  %v269 = vpack.c.b16 %v222, %v221
  %v270 = vpack.c.b16 %v224, %v223
  %v271 = vpack.c.b16 %v226, %v225
  %v272 = vpack.c.b16 %v228, %v227
  %v273 = vpack.c.b16 %v230, %v229
  %v274 = vpack.c.b16 %v232, %v231
  %v275 = vpack.c.b16 %v234, %v233
  %v276 = vpack.c.b16 %v236, %v235
  %v277 = vpack.c.b16 %v238, %v237
  %v278 = vpack.c.b16 %v240, %v239
  %v279 = vpack.c.b16 %v242, %v241
  %v280 = vpack.c.b16 %v244, %v243
  %v281 = vpack.c.b16 %v246, %v245
  %v282 = vpack.c.b16 %v248, %v247
  %v283 = vpack.c.b16 %v250, %v249
  %v284 = vpack.c.b16 %v252, %v251
  %317 = vmatprep.subr.bf16.mxu0 0
  %318 = vmatpush1.bf16.msra.mxu0 %v253
  %319 = vmatprep.subr.bf16.mxu0 0
  %320 = vmatpush1.bf16.msra.mxu0 %v254
  %321 = vmatprep.subr.bf16.mxu0 0
  %322 = vmatpush1.bf16.msra.mxu0 %v255
  %323 = vmatprep.subr.bf16.mxu0 0
  %324 = vmatpush1.bf16.msra.mxu0 %v256
  %325 = vmatprep.subr.bf16.mxu0 0
  %326 = vmatpush1.bf16.msra.mxu0 %v257
  %327 = vmatprep.subr.bf16.mxu0 0
  %328 = vmatpush1.bf16.msra.mxu0 %v258
  %329 = vmatprep.subr.bf16.mxu0 0
  %330 = vmatpush1.bf16.msra.mxu0 %v259
  %331 = vmatprep.subr.bf16.mxu0 0
  %332 = vmatpush1.bf16.msra.mxu0 %v260
  %333 = vmatprep.subr.bf16.mxu0 0
  %334 = vmatpush1.bf16.msra.mxu0 %v261
  %335 = vmatprep.subr.bf16.mxu0 0
  %336 = vmatpush1.bf16.msra.mxu0 %v262
  %337 = vmatprep.subr.bf16.mxu0 0
  %338 = vmatpush1.bf16.msra.mxu0 %v263
  %339 = vmatprep.subr.bf16.mxu0 0
  %340 = vmatpush1.bf16.msra.mxu0 %v264
  %341 = vmatprep.subr.bf16.mxu0 0
  %342 = vmatpush1.bf16.msra.mxu0 %v265
  %343 = vmatprep.subr.bf16.mxu0 0
  %344 = vmatpush1.bf16.msra.mxu0 %v266
  %345 = vmatprep.subr.bf16.mxu0 0
  %346 = vmatpush1.bf16.msra.mxu0 %v267
  %347 = vmatprep.subr.bf16.mxu0 0
  %348 = vmatpush1.bf16.msra.mxu0 %v268
  %349 = vmatprep.mubr.bf16.mxu0 %v118
  %350 = vmatmul.mubr.bf16.gmra.mrb[0].mxu0 %v117
  %v351 = vpop.f32.mrb[0].mxu0
  %v352 = vadd.f32 %v109, %v351
  %v353 = vpop.f32.mrb[0].mxu0
  %v354 = vpop.f32.mrb[0].mxu0
  %v355 = vpop.f32.mrb[0].mxu0
  %356 = vdwg.mxu0
  %357 = vmatprep.subr.bf16.mxu0 0
  %358 = vmatpush1.bf16.msra.mxu0 %v269
  %359 = vmatprep.subr.bf16.mxu0 0
  %360 = vmatpush1.bf16.msra.mxu0 %v270
  %361 = vmatprep.subr.bf16.mxu0 0
  %362 = vmatpush1.bf16.msra.mxu0 %v271
  %363 = vmatprep.subr.bf16.mxu0 0
  %364 = vmatpush1.bf16.msra.mxu0 %v272
  %365 = vmatprep.subr.bf16.mxu0 0
  %366 = vmatpush1.bf16.msra.mxu0 %v273
  %367 = vmatprep.subr.bf16.mxu0 0
  %368 = vmatpush1.bf16.msra.mxu0 %v274
  %369 = vmatprep.subr.bf16.mxu0 0
  %370 = vmatpush1.bf16.msra.mxu0 %v275
  %371 = vmatprep.subr.bf16.mxu0 0
  %372 = vmatpush1.bf16.msra.mxu0 %v276
  %373 = vmatprep.subr.bf16.mxu0 0
  %374 = vmatpush1.bf16.msra.mxu0 %v277
  %375 = vmatprep.subr.bf16.mxu0 0
  %376 = vmatpush1.bf16.msra.mxu0 %v278
  %377 = vmatprep.subr.bf16.mxu0 0
  %378 = vmatpush1.bf16.msra.mxu0 %v279
  %379 = vmatprep.subr.bf16.mxu0 0
  %380 = vmatpush1.bf16.msra.mxu0 %v280
  %381 = vmatprep.subr.bf16.mxu0 0
  %382 = vmatpush1.bf16.msra.mxu0 %v281
  %383 = vmatprep.subr.bf16.mxu0 0
  %384 = vmatpush1.bf16.msra.mxu0 %v282
  %385 = vmatprep.subr.bf16.mxu0 0
  %386 = vmatpush1.bf16.msra.mxu0 %v283
  %387 = vmatprep.subr.bf16.mxu0 0
  %388 = vmatpush1.bf16.msra.mxu0 %v284
  %389 = vmatprep.mubr.bf16.mxu0 %v120
  %390 = vmatmul.mubr.bf16.gmra.mrb[0].mxu0 %v119
  %v391 = vpop.f32.mrb[0].mxu0
  %v392 = vadd.f32 %v352, %v391
  %v393 = vpop.f32.mrb[0].mxu0
  %v394 = vpop.f32.mrb[0].mxu0
  %v395 = vpop.f32.mrb[0].mxu0
  %396 = vdwg.mxu0
  %v397 = vmax.f32 %v392, 0.0
  %v398 = vpack.c.bf16 %v397, %v397
  %v399 = vld [vmem:[%s4] sm:$0xf]
  %v400 = vld [vmem:[%s4 + $0x4] sm:$0xf]
  %v401 = vld [vmem:[%s4 + $0x8] sm:$0xf]
  %v402 = vld [vmem:[%s4 + $0xc] sm:$0xf]
  %v403 = vld [vmem:[%s4 + $0x10] sm:$0xf]
  %v404 = vld [vmem:[%s4 + $0x14] sm:$0xf]
  %v405 = vld [vmem:[%s4 + $0x18] sm:$0xf]
  %v406 = vld [vmem:[%s4 + $0x1c] sm:$0xf]
  %v407 = vld [vmem:[%s5] sm:$0x1]
  %v409 = vlaneseq
  %v410 = vshrl.u32 %v409, 7
  %v411 = vsub.s32 0, %v410
  %v412 = vrot.slane %v407, %v411
  %v422 = vunpack.c.l.b16 %v399
  %v423 = vunpack.c.l.b16 %v400
  %v424 = vunpack.c.l.b16 %v401
  %v425 = vunpack.c.l.b16 %v402
  %v426 = vunpack.c.l.b16 %v403
  %v427 = vunpack.c.l.b16 %v404
  %v428 = vunpack.c.l.b16 %v405
  %v429 = vunpack.c.l.b16 %v406
  %v430 = vpack.c.b16 %v423, %v422
  %v431 = vpack.c.b16 %v425, %v424
  %v432 = vpack.c.b16 %v427, %v426
  %v433 = vpack.c.b16 %v429, %v428
  %vm438 = vcmask 523264
  %v440 = vsel %vm438, %v398, 0
  %442 = vmatprep.subr.bf16.mxu0 0
  %443 = vmatpush1.bf16.msra.mxu0 %v430
  %444 = vmatprep.subr.bf16.mxu0 0
  %445 = vmatpush1.bf16.msra.mxu0 %v431
  %446 = vmatprep.subr.bf16.mxu0 0
  %447 = vmatpush1.bf16.msra.mxu0 %v432
  %448 = vmatprep.subr.bf16.mxu0 0
  %449 = vmatpush1.bf16.msra.mxu0 %v433
  %450 = vmatprep.subr.bf16.mxu0 0
  %451 = vmatpush1.bf16.msra.mxu0 0
  %452 = vmatprep.subr.bf16.mxu0 0
  %453 = vmatpush1.bf16.msra.mxu0 0
  %454 = vmatprep.subr.bf16.mxu0 0
  %455 = vmatpush1.bf16.msra.mxu0 0
  %456 = vmatprep.subr.bf16.mxu0 0
  %457 = vmatpush1.bf16.msra.mxu0 0
  %458 = vmatprep.subr.bf16.mxu0 0
  %459 = vmatpush1.bf16.msra.mxu0 0
  %460 = vmatprep.subr.bf16.mxu0 0
  %461 = vmatpush1.bf16.msra.mxu0 0
  %462 = vmatprep.subr.bf16.mxu0 0
  %463 = vmatpush1.bf16.msra.mxu0 0
  %464 = vmatprep.subr.bf16.mxu0 0
  %465 = vmatpush1.bf16.msra.mxu0 0
  %466 = vmatprep.subr.bf16.mxu0 0
  %467 = vmatpush1.bf16.msra.mxu0 0
  %468 = vmatprep.subr.bf16.mxu0 0
  %469 = vmatpush1.bf16.msra.mxu0 0
  %470 = vmatprep.subr.bf16.mxu0 0
  %471 = vmatpush1.bf16.msra.mxu0 0
  %472 = vmatprep.subr.bf16.mxu0 0
  %473 = vmatpush1.bf16.msra.mxu0 0
  %474 = vmatprep.mubr.bf16.mxu0 0
  %475 = vmatmul.mubr.bf16.gmra.mrb[0].mxu0 %v440
  %v476 = vpop.f32.mrb[0].mxu0
  %v477 = vadd.f32 %v412, %v476
  %v478 = vpop.f32.mrb[0].mxu0
  %v479 = vpop.f32.mrb[0].mxu0
  %v480 = vpop.f32.mrb[0].mxu0
  %481 = vdwg.mxu0
  %v482 = vlaneseq
  %v483 = vand.u32 %v482, 127
  %vm484 = vcmp.lt.s32.totalorder %v483, 8
  %v485 = vsel %vm484, %v477, -inf
  %vm486 = vcmask 326656
  %v487 = vsel %vm486, %v485, -inf
  %488 = vmax.xlane.f32.xlu0 %v487
  %v489 = vpop.xlane.xlu0 %488
  %v490 = vsub.f32 %v477, %v489
  %v491 = vsel %vm484, %v490, 0.0
  %v492 = vmul.f32 %v491, 1.442695
  %v493 = vpow.pop %v492
  %v494 = vsel %vm484, %v493, 0.0
  %v495 = vsel %vm486, %v494, 0.0
  %496 = vadd.xlane.f32.xlu0 %v495
  %v497 = vpop.xlane.xlu0 %496
  %v498 = vrcp.pop %v497
  %v499 = vmul.f32 %v493, %v498
  %v500 = vsel %vm484, %v499, %v477
  %501 = vst.msk [vmem:[%s10] sm:$0xff] %vm486, %v500
  %v502 = vld [vmem:[%s1] sm:$0xf]
  %v503 = vld [vmem:[%s1 + $0x4] sm:$0xf]
  %v504 = vld [vmem:[%s1 + $0x8] sm:$0xf]
  %v505 = vld [vmem:[%s1 + $0xc] sm:$0xf]
  %v506 = vld [vmem:[%s1 + $0x10] sm:$0xf]
  %v507 = vld [vmem:[%s1 + $0x14] sm:$0xf]
  %v508 = vld [vmem:[%s1 + $0x18] sm:$0xf]
  %v509 = vld [vmem:[%s1 + $0x1c] sm:$0xf]
  %v510 = vld [vmem:[%s1 + $0x20] sm:$0xf]
  %v511 = vld [vmem:[%s1 + $0x24] sm:$0xf]
  %v512 = vld [vmem:[%s1 + $0x28] sm:$0xf]
  %v513 = vld [vmem:[%s1 + $0x2c] sm:$0xf]
  %v514 = vld [vmem:[%s1 + $0x30] sm:$0xf]
  %v515 = vld [vmem:[%s1 + $0x34] sm:$0xf]
  %v516 = vld [vmem:[%s1 + $0x38] sm:$0xf]
  %v517 = vld [vmem:[%s1 + $0x3c] sm:$0xf]
  %v518 = vld [vmem:[%s6] sm:$0xf]
  %v519 = vld [vmem:[%s6 + $0x4] sm:$0xf]
  %v520 = vld [vmem:[%s6 + $0x8] sm:$0xf]
  %v521 = vld [vmem:[%s6 + $0xc] sm:$0xf]
  %v522 = vld [vmem:[%s7] sm:$0x1]
  %v524 = vlaneseq
  %v525 = vshrl.u32 %v524, 7
  %v526 = vsub.s32 0, %v525
  %v527 = vrot.slane %v522, %v526
  %v545 = vunpack.c.l.b16 %v502
  %v546 = vunpack.c.l.b16 %v503
  %v547 = vunpack.c.l.b16 %v504
  %v548 = vunpack.c.l.b16 %v505
  %v549 = vunpack.c.l.b16 %v506
  %v550 = vunpack.c.l.b16 %v507
  %v551 = vunpack.c.l.b16 %v508
  %v552 = vunpack.c.l.b16 %v509
  %v553 = vunpack.c.l.b16 %v510
  %v554 = vunpack.c.l.b16 %v511
  %v555 = vunpack.c.l.b16 %v512
  %v556 = vunpack.c.l.b16 %v513
  %v557 = vunpack.c.l.b16 %v514
  %v558 = vunpack.c.l.b16 %v515
  %v559 = vunpack.c.l.b16 %v516
  %v560 = vunpack.c.l.b16 %v517
  %v561 = vpack.c.b16 %v546, %v545
  %v562 = vpack.c.b16 %v548, %v547
  %v563 = vpack.c.b16 %v550, %v549
  %v564 = vpack.c.b16 %v552, %v551
  %v565 = vpack.c.b16 %v554, %v553
  %v566 = vpack.c.b16 %v556, %v555
  %v567 = vpack.c.b16 %v558, %v557
  %v568 = vpack.c.b16 %v560, %v559
  %v573 = vunpack.c.l.b16 %v518
  %v574 = vunpack.c.l.b16 %v519
  %v575 = vunpack.c.l.b16 %v520
  %v576 = vunpack.c.l.b16 %v521
  %v577 = vpack.c.b16 %v574, %v573
  %v578 = vpack.c.b16 %v576, %v575
  %vm581 = vcmask 261120
  %v583 = vsel %vm581, %v561, 0
  %v586 = vsel %vm581, %v562, 0
  %v589 = vsel %vm581, %v563, 0
  %v592 = vsel %vm581, %v564, 0
  %v595 = vsel %vm581, %v565, 0
  %v598 = vsel %vm581, %v566, 0
  %v601 = vsel %vm581, %v567, 0
  %v604 = vsel %vm581, %v568, 0
  %606 = vmatprep.subr.bf16.mxu0 0
  %607 = vmatpush1.bf16.msra.mxu0 %v577
  %608 = vmatprep.subr.bf16.mxu0 0
  %609 = vmatpush1.bf16.msra.mxu0 %v578
  %610 = vmatprep.subr.bf16.mxu0 0
  %611 = vmatpush1.bf16.msra.mxu0 0
  %612 = vmatprep.subr.bf16.mxu0 0
  %613 = vmatpush1.bf16.msra.mxu0 0
  %614 = vmatprep.subr.bf16.mxu0 0
  %615 = vmatpush1.bf16.msra.mxu0 0
  %616 = vmatprep.subr.bf16.mxu0 0
  %617 = vmatpush1.bf16.msra.mxu0 0
  %618 = vmatprep.subr.bf16.mxu0 0
  %619 = vmatpush1.bf16.msra.mxu0 0
  %620 = vmatprep.subr.bf16.mxu0 0
  %621 = vmatpush1.bf16.msra.mxu0 0
  %622 = vmatprep.subr.bf16.mxu0 0
  %623 = vmatpush1.bf16.msra.mxu0 0
  %624 = vmatprep.subr.bf16.mxu0 0
  %625 = vmatpush1.bf16.msra.mxu0 0
  %626 = vmatprep.subr.bf16.mxu0 0
  %627 = vmatpush1.bf16.msra.mxu0 0
  %628 = vmatprep.subr.bf16.mxu0 0
  %629 = vmatpush1.bf16.msra.mxu0 0
  %630 = vmatprep.subr.bf16.mxu0 0
  %631 = vmatpush1.bf16.msra.mxu0 0
  %632 = vmatprep.subr.bf16.mxu0 0
  %633 = vmatpush1.bf16.msra.mxu0 0
  %634 = vmatprep.subr.bf16.mxu0 0
  %635 = vmatpush1.bf16.msra.mxu0 0
  %636 = vmatprep.subr.bf16.mxu0 0
  %637 = vmatpush1.bf16.msra.mxu0 0
  %638 = vmatprep.mubr.bf16.mxu0 0
  %639 = vmatmul.mubr.bf16.gmra.mrb[0].mxu0 %v583
  %v640 = vpop.f32.mrb[0].mxu0
  %v641 = vadd.f32 %v527, %v640
  %v642 = vpop.f32.mrb[0].mxu0
  %v643 = vpop.f32.mrb[0].mxu0
  %v644 = vadd.f32 %v527, %v643
  %v645 = vpop.f32.mrb[0].mxu0
  %646 = vmatprep.mubr.bf16.mxu0 0
  %647 = vmatmul.mubr.bf16.gmra.mrb[0].mxu0 %v586
  %v648 = vpop.f32.mrb[0].mxu0
  %v649 = vadd.f32 %v527, %v648
  %v650 = vpop.f32.mrb[0].mxu0
  %v651 = vpop.f32.mrb[0].mxu0
  %v652 = vadd.f32 %v527, %v651
  %v653 = vpop.f32.mrb[0].mxu0
  %654 = vmatprep.mubr.bf16.mxu0 0
  %655 = vmatmul.mubr.bf16.gmra.mrb[0].mxu0 %v589
  %v656 = vpop.f32.mrb[0].mxu0
  %v657 = vadd.f32 %v527, %v656
  %v658 = vpop.f32.mrb[0].mxu0
  %v659 = vpop.f32.mrb[0].mxu0
  %v660 = vadd.f32 %v527, %v659
  %v661 = vpop.f32.mrb[0].mxu0
  %662 = vmatprep.mubr.bf16.mxu0 0
  %663 = vmatmul.mubr.bf16.gmra.mrb[0].mxu0 %v592
  %v664 = vpop.f32.mrb[0].mxu0
  %v665 = vadd.f32 %v527, %v664
  %v666 = vpop.f32.mrb[0].mxu0
  %v667 = vpop.f32.mrb[0].mxu0
  %v668 = vadd.f32 %v527, %v667
  %v669 = vpop.f32.mrb[0].mxu0
  %670 = vmatprep.mubr.bf16.mxu0 0
  %671 = vmatmul.mubr.bf16.gmra.mrb[0].mxu0 %v595
  %v672 = vpop.f32.mrb[0].mxu0
  %v673 = vadd.f32 %v527, %v672
  %v674 = vpop.f32.mrb[0].mxu0
  %v675 = vpop.f32.mrb[0].mxu0
  %v676 = vadd.f32 %v527, %v675
  %v677 = vpop.f32.mrb[0].mxu0
  %678 = vmatprep.mubr.bf16.mxu0 0
  %679 = vmatmul.mubr.bf16.gmra.mrb[0].mxu0 %v598
  %v680 = vpop.f32.mrb[0].mxu0
  %v681 = vadd.f32 %v527, %v680
  %v682 = vpop.f32.mrb[0].mxu0
  %v683 = vpop.f32.mrb[0].mxu0
  %v684 = vadd.f32 %v527, %v683
  %v685 = vpop.f32.mrb[0].mxu0
  %686 = vmatprep.mubr.bf16.mxu0 0
  %687 = vmatmul.mubr.bf16.gmra.mrb[0].mxu0 %v601
  %v688 = vpop.f32.mrb[0].mxu0
  %v689 = vadd.f32 %v527, %v688
  %v690 = vpop.f32.mrb[0].mxu0
  %v691 = vpop.f32.mrb[0].mxu0
  %v692 = vadd.f32 %v527, %v691
  %v693 = vpop.f32.mrb[0].mxu0
  %694 = vmatprep.mubr.bf16.mxu0 0
  %695 = vmatmul.mubr.bf16.gmra.mrb[0].mxu0 %v604
  %v696 = vpop.f32.mrb[0].mxu0
  %v697 = vadd.f32 %v527, %v696
  %v698 = vpop.f32.mrb[0].mxu0
  %v699 = vpop.f32.mrb[0].mxu0
  %v700 = vadd.f32 %v527, %v699
  %v701 = vpop.f32.mrb[0].mxu0
  %702 = vdwg.mxu0
  %v703 = vmax.f32 %v641, 0.0
  %v704 = vmax.f32 %v644, 0.0
  %v705 = vmax.f32 %v649, 0.0
  %v706 = vmax.f32 %v652, 0.0
  %v707 = vmax.f32 %v657, 0.0
  %v708 = vmax.f32 %v660, 0.0
  %v709 = vmax.f32 %v665, 0.0
  %v710 = vmax.f32 %v668, 0.0
  %v711 = vmax.f32 %v673, 0.0
  %v712 = vmax.f32 %v676, 0.0
  %v713 = vmax.f32 %v681, 0.0
  %v714 = vmax.f32 %v684, 0.0
  %v715 = vmax.f32 %v689, 0.0
  %v716 = vmax.f32 %v692, 0.0
  %v717 = vmax.f32 %v697, 0.0
  %v718 = vmax.f32 %v700, 0.0
  %v719 = vpack.c.bf16 %v704, %v703
  %v720 = vpack.c.bf16 %v706, %v705
  %v721 = vpack.c.bf16 %v708, %v707
  %v722 = vpack.c.bf16 %v710, %v709
  %v723 = vpack.c.bf16 %v712, %v711
  %v724 = vpack.c.bf16 %v714, %v713
  %v725 = vpack.c.bf16 %v716, %v715
  %v726 = vpack.c.bf16 %v718, %v717
  %v727 = vld [vmem:[%s8] sm:$0xf]
  %v728 = vld [vmem:[%s8 + $0x4] sm:$0xf]
  %v729 = vld [vmem:[%s8 + $0x8] sm:$0xf]
  %v730 = vld [vmem:[%s8 + $0xc] sm:$0xf]
  %v731 = vld [vmem:[%s9] sm:$0x1]
  %v733 = vlaneseq
  %v734 = vshrl.u32 %v733, 7
  %v735 = vsub.s32 0, %v734
  %v736 = vrot.slane %v731, %v735
  %v742 = vunpack.c.l.b16 %v727
  %v743 = vunpack.c.l.b16 %v728
  %v744 = vunpack.c.l.b16 %v729
  %v745 = vunpack.c.l.b16 %v730
  %v746 = vpack.c.b16 %v743, %v742
  %v747 = vpack.c.b16 %v745, %v744
  %v751 = vsel %vm581, %v719, 0
  %v754 = vsel %vm581, %v720, 0
  %v757 = vsel %vm581, %v721, 0
  %v760 = vsel %vm581, %v722, 0
  %v763 = vsel %vm581, %v723, 0
  %v766 = vsel %vm581, %v724, 0
  %v769 = vsel %vm581, %v725, 0
  %v772 = vsel %vm581, %v726, 0
  %774 = vmatprep.subr.bf16.mxu0 0
  %775 = vmatpush1.bf16.msra.mxu0 %v746
  %776 = vmatprep.subr.bf16.mxu0 0
  %777 = vmatpush1.bf16.msra.mxu0 %v747
  %778 = vmatprep.subr.bf16.mxu0 0
  %779 = vmatpush1.bf16.msra.mxu0 0
  %780 = vmatprep.subr.bf16.mxu0 0
  %781 = vmatpush1.bf16.msra.mxu0 0
  %782 = vmatprep.subr.bf16.mxu0 0
  %783 = vmatpush1.bf16.msra.mxu0 0
  %784 = vmatprep.subr.bf16.mxu0 0
  %785 = vmatpush1.bf16.msra.mxu0 0
  %786 = vmatprep.subr.bf16.mxu0 0
  %787 = vmatpush1.bf16.msra.mxu0 0
  %788 = vmatprep.subr.bf16.mxu0 0
  %789 = vmatpush1.bf16.msra.mxu0 0
  %790 = vmatprep.subr.bf16.mxu0 0
  %791 = vmatpush1.bf16.msra.mxu0 0
  %792 = vmatprep.subr.bf16.mxu0 0
  %793 = vmatpush1.bf16.msra.mxu0 0
  %794 = vmatprep.subr.bf16.mxu0 0
  %795 = vmatpush1.bf16.msra.mxu0 0
  %796 = vmatprep.subr.bf16.mxu0 0
  %797 = vmatpush1.bf16.msra.mxu0 0
  %798 = vmatprep.subr.bf16.mxu0 0
  %799 = vmatpush1.bf16.msra.mxu0 0
  %800 = vmatprep.subr.bf16.mxu0 0
  %801 = vmatpush1.bf16.msra.mxu0 0
  %802 = vmatprep.subr.bf16.mxu0 0
  %803 = vmatpush1.bf16.msra.mxu0 0
  %804 = vmatprep.subr.bf16.mxu0 0
  %805 = vmatpush1.bf16.msra.mxu0 0
  %806 = vmatprep.mubr.bf16.mxu0 0
  %807 = vmatmul.mubr.bf16.gmra.mrb[0].mxu0 %v751
  %v808 = vpop.f32.mrb[0].mxu0
  %v809 = vadd.f32 %v736, %v808
  %v810 = vpop.f32.mrb[0].mxu0
  %v811 = vpop.f32.mrb[0].mxu0
  %v812 = vadd.f32 %v736, %v811
  %v813 = vpop.f32.mrb[0].mxu0
  %814 = vmatprep.mubr.bf16.mxu0 0
  %815 = vmatmul.mubr.bf16.gmra.mrb[0].mxu0 %v754
  %v816 = vpop.f32.mrb[0].mxu0
  %v817 = vadd.f32 %v736, %v816
  %v818 = vpop.f32.mrb[0].mxu0
  %v819 = vpop.f32.mrb[0].mxu0
  %v820 = vadd.f32 %v736, %v819
  %v821 = vpop.f32.mrb[0].mxu0
  %822 = vmatprep.mubr.bf16.mxu0 0
  %823 = vmatmul.mubr.bf16.gmra.mrb[0].mxu0 %v757
  %v824 = vpop.f32.mrb[0].mxu0
  %v825 = vadd.f32 %v736, %v824
  %v826 = vpop.f32.mrb[0].mxu0
  %v827 = vpop.f32.mrb[0].mxu0
  %v828 = vadd.f32 %v736, %v827
  %v829 = vpop.f32.mrb[0].mxu0
  %830 = vmatprep.mubr.bf16.mxu0 0
  %831 = vmatmul.mubr.bf16.gmra.mrb[0].mxu0 %v760
  %v832 = vpop.f32.mrb[0].mxu0
  %v833 = vadd.f32 %v736, %v832
  %v834 = vpop.f32.mrb[0].mxu0
  %v835 = vpop.f32.mrb[0].mxu0
  %v836 = vadd.f32 %v736, %v835
  %v837 = vpop.f32.mrb[0].mxu0
  %838 = vmatprep.mubr.bf16.mxu0 0
  %839 = vmatmul.mubr.bf16.gmra.mrb[0].mxu0 %v763
  %v840 = vpop.f32.mrb[0].mxu0
  %v841 = vadd.f32 %v736, %v840
  %v842 = vpop.f32.mrb[0].mxu0
  %v843 = vpop.f32.mrb[0].mxu0
  %v844 = vadd.f32 %v736, %v843
  %v845 = vpop.f32.mrb[0].mxu0
  %846 = vmatprep.mubr.bf16.mxu0 0
  %847 = vmatmul.mubr.bf16.gmra.mrb[0].mxu0 %v766
  %v848 = vpop.f32.mrb[0].mxu0
  %v849 = vadd.f32 %v736, %v848
  %v850 = vpop.f32.mrb[0].mxu0
  %v851 = vpop.f32.mrb[0].mxu0
  %v852 = vadd.f32 %v736, %v851
  %v853 = vpop.f32.mrb[0].mxu0
  %854 = vmatprep.mubr.bf16.mxu0 0
  %855 = vmatmul.mubr.bf16.gmra.mrb[0].mxu0 %v769
  %v856 = vpop.f32.mrb[0].mxu0
  %v857 = vadd.f32 %v736, %v856
  %v858 = vpop.f32.mrb[0].mxu0
  %v859 = vpop.f32.mrb[0].mxu0
  %v860 = vadd.f32 %v736, %v859
  %v861 = vpop.f32.mrb[0].mxu0
  %862 = vmatprep.mubr.bf16.mxu0 0
  %863 = vmatmul.mubr.bf16.gmra.mrb[0].mxu0 %v772
  %v864 = vpop.f32.mrb[0].mxu0
  %v865 = vadd.f32 %v736, %v864
  %v866 = vpop.f32.mrb[0].mxu0
  %v867 = vpop.f32.mrb[0].mxu0
  %v868 = vadd.f32 %v736, %v867
  %v869 = vpop.f32.mrb[0].mxu0
  %870 = vdwg.mxu0
  %v871 = vxor.u32 %v809, 2147483648
  %v872 = vxor.u32 %v812, 2147483648
  %v873 = vxor.u32 %v817, 2147483648
  %v874 = vxor.u32 %v820, 2147483648
  %v875 = vxor.u32 %v825, 2147483648
  %v876 = vxor.u32 %v828, 2147483648
  %v877 = vxor.u32 %v833, 2147483648
  %v878 = vxor.u32 %v836, 2147483648
  %v879 = vxor.u32 %v841, 2147483648
  %v880 = vxor.u32 %v844, 2147483648
  %v881 = vxor.u32 %v849, 2147483648
  %v882 = vxor.u32 %v852, 2147483648
  %v883 = vxor.u32 %v857, 2147483648
  %v884 = vxor.u32 %v860, 2147483648
  %v885 = vxor.u32 %v865, 2147483648
  %v886 = vxor.u32 %v868, 2147483648
  %v887 = vmul.f32 %v871, 1.442695
  %v888 = vpow.pop %v887
  %v889 = vmul.f32 %v872, 1.442695
  %v890 = vpow.pop %v889
  %v891 = vmul.f32 %v873, 1.442695
  %v892 = vpow.pop %v891
  %v893 = vmul.f32 %v874, 1.442695
  %v894 = vpow.pop %v893
  %v895 = vmul.f32 %v875, 1.442695
  %v896 = vpow.pop %v895
  %v897 = vmul.f32 %v876, 1.442695
  %v898 = vpow.pop %v897
  %v899 = vmul.f32 %v877, 1.442695
  %v900 = vpow.pop %v899
  %v901 = vmul.f32 %v878, 1.442695
  %v902 = vpow.pop %v901
  %v903 = vmul.f32 %v879, 1.442695
  %v904 = vpow.pop %v903
  %v905 = vmul.f32 %v880, 1.442695
  %v906 = vpow.pop %v905
  %v907 = vmul.f32 %v881, 1.442695
  %v908 = vpow.pop %v907
  %v909 = vmul.f32 %v882, 1.442695
  %v910 = vpow.pop %v909
  %v911 = vmul.f32 %v883, 1.442695
  %v912 = vpow.pop %v911
  %v913 = vmul.f32 %v884, 1.442695
  %v914 = vpow.pop %v913
  %v915 = vmul.f32 %v885, 1.442695
  %v916 = vpow.pop %v915
  %v917 = vmul.f32 %v886, 1.442695
  %v918 = vpow.pop %v917
  %v919 = vadd.f32 %v888, 1.0
  %v920 = vadd.f32 %v890, 1.0
  %v921 = vadd.f32 %v892, 1.0
  %v922 = vadd.f32 %v894, 1.0
  %v923 = vadd.f32 %v896, 1.0
  %v924 = vadd.f32 %v898, 1.0
  %v925 = vadd.f32 %v900, 1.0
  %v926 = vadd.f32 %v902, 1.0
  %v927 = vadd.f32 %v904, 1.0
  %v928 = vadd.f32 %v906, 1.0
  %v929 = vadd.f32 %v908, 1.0
  %v930 = vadd.f32 %v910, 1.0
  %v931 = vadd.f32 %v912, 1.0
  %v932 = vadd.f32 %v914, 1.0
  %v933 = vadd.f32 %v916, 1.0
  %v934 = vadd.f32 %v918, 1.0
  %v935 = vrcp.pop %v919
  %v936 = vmul.f32 1.0, %v935
  %v937 = vrcp.pop %v920
  %v938 = vmul.f32 1.0, %v937
  %v939 = vrcp.pop %v921
  %v940 = vmul.f32 1.0, %v939
  %v941 = vrcp.pop %v922
  %v942 = vmul.f32 1.0, %v941
  %v943 = vrcp.pop %v923
  %v944 = vmul.f32 1.0, %v943
  %v945 = vrcp.pop %v924
  %v946 = vmul.f32 1.0, %v945
  %v947 = vrcp.pop %v925
  %v948 = vmul.f32 1.0, %v947
  %v949 = vrcp.pop %v926
  %v950 = vmul.f32 1.0, %v949
  %v951 = vrcp.pop %v927
  %v952 = vmul.f32 1.0, %v951
  %v953 = vrcp.pop %v928
  %v954 = vmul.f32 1.0, %v953
  %v955 = vrcp.pop %v929
  %v956 = vmul.f32 1.0, %v955
  %v957 = vrcp.pop %v930
  %v958 = vmul.f32 1.0, %v957
  %v959 = vrcp.pop %v931
  %v960 = vmul.f32 1.0, %v959
  %v961 = vrcp.pop %v932
  %v962 = vmul.f32 1.0, %v961
  %v963 = vrcp.pop %v933
  %v964 = vmul.f32 1.0, %v963
  %v965 = vrcp.pop %v934
  %v966 = vmul.f32 1.0, %v965
  %vm967 = vcmask 64512
  %968 = vst.msk [vmem:[%s11] sm:$0xff] %vm967, %v936
  %969 = vst.msk [vmem:[%s11 + $0x8] sm:$0xff] %vm967, %v938
  %970 = vst.msk [vmem:[%s11 + $0x10] sm:$0xff] %vm967, %v940
  %971 = vst.msk [vmem:[%s11 + $0x18] sm:$0xff] %vm967, %v942
  %972 = vst.msk [vmem:[%s11 + $0x20] sm:$0xff] %vm967, %v944
  %973 = vst.msk [vmem:[%s11 + $0x28] sm:$0xff] %vm967, %v946
  %974 = vst.msk [vmem:[%s11 + $0x30] sm:$0xff] %vm967, %v948
  %975 = vst.msk [vmem:[%s11 + $0x38] sm:$0xff] %vm967, %v950
  %976 = vst.msk [vmem:[%s11 + $0x40] sm:$0xff] %vm967, %v952
  %977 = vst.msk [vmem:[%s11 + $0x48] sm:$0xff] %vm967, %v954
  %978 = vst.msk [vmem:[%s11 + $0x50] sm:$0xff] %vm967, %v956
  %979 = vst.msk [vmem:[%s11 + $0x58] sm:$0xff] %vm967, %v958
  %980 = vst.msk [vmem:[%s11 + $0x60] sm:$0xff] %vm967, %v960
  %981 = vst.msk [vmem:[%s11 + $0x68] sm:$0xff] %vm967, %v962
  %982 = vst.msk [vmem:[%s11 + $0x70] sm:$0xff] %vm967, %v964
  %983 = vst.msk [vmem:[%s11 + $0x78] sm:$0xff] %vm967, %v966
  // Predicated region
  $region42: #{mask_rcnn_forward.3} parent=0 // pred_check
    _
  $region43: #{mask_rcnn_forward.3} parent=0 // pred_check_branch
    %985 = sbr.rel (0) target = $region45
  $region44: #{mask_rcnn_forward.3} parent=0 // pred_region
    _
  $region45: #{mask_rcnn_forward.3} parent=0 // pred_fallthru
    _
  // Predicated region
  $region46: #{mask_rcnn_forward.3} parent=0 // pred_check
    _
  $region47: #{mask_rcnn_forward.3} parent=0 // pred_check_branch
    %987 = sbr.rel (0) target = $region49
  $region48: #{mask_rcnn_forward.3} parent=0 // pred_region
    _
  $region49: #{mask_rcnn_forward.3} parent=0 // pred_fallthru
    _
  // Predicated region
  $region50: #{mask_rcnn_forward.3} parent=0 // pred_check
    _
  $region51: #{mask_rcnn_forward.3} parent=0 // pred_check_branch
    %989 = sbr.rel (0) target = $region53
  $region52: #{mask_rcnn_forward.3} parent=0 // pred_region
    _
  $region53: #{mask_rcnn_forward.3} parent=0 // pred_fallthru
    _
  // Predicated region
  $region54: #{mask_rcnn_forward.3} parent=0 // pred_check
    _
  $region55: #{mask_rcnn_forward.3} parent=0 // pred_check_branch
    %991 = sbr.rel (0) target = $region57
  $region56: #{mask_rcnn_forward.3} parent=0 // pred_region
    _
  $region57: #{mask_rcnn_forward.3} parent=0 // pred_fallthru
    _

</llo_original>
